<compile_context>
chip_gen: v7x
topology: tpu7x:2x2x1
jax: 0.10.0
libtpu: 0.0.40
codegen_flags: <defaults>
</compile_context>

<pallas_src>
import functools

import jax
import jax.numpy as jnp
from jax import lax
from jax.experimental import pallas as pl
from jax.experimental.pallas import tpu as pltpu


def _gate_conv_lstm_kernel(
    # static config
    K, P, Wp, SE4, PF, CP, LO, inv_S,
    # refs (inputs..., outputs...)
    flat_ref, wide_ref, c_ref, wtap_ref, btap_ref, wg_ref, bg_ref,
    ch_ref, cc_ref,
):
    # ---- AdaptiveAvgPool2d(1) on the fused x|h slab (zero padding excluded) ----
    xh_g = jnp.sum(flat_ref[0], axis=0, keepdims=True) * inv_S        # (1, CD)

    # ---- i/f/o gates: ONE fused 1-row MXU matmul ------------------------------
    # (gate weights/bias are pre lane-tiled so each gate fills a CP lane block)
    glin = (jnp.dot(xh_g, wg_ref[...], preferred_element_type=jnp.float32)
            + bg_ref[...])                                            # (1, 3*CP)
    gates = jax.nn.sigmoid(glin)
    ci = gates[:, 0:CP]
    cf = gates[:, CP:2 * CP]
    co = gates[:, 2 * CP:3 * CP]

    # ---- fused depthwise->pointwise conv: K*K accumulating MXU matmuls --------
    # wide_ref carries PF spatial chunks side-by-side on lanes; wtap_ref holds the
    # matching block-diagonal fused weight per tap, so each dot yields the
    # lane-packed (SE4, CP) partial sum directly (no masks, no VPU accumulation).
    acc = None
    for u in range(K):
        for v in range(K):
            t = u * K + v
            start = LO + u * Wp + (v - P)
            lhs = wide_ref[0, start:start + SE4, :]                   # (SE4, PF*CD)
            part = jnp.dot(lhs, wtap_ref[t],
                           preferred_element_type=jnp.float32)        # (SE4, CP)
            if acc is None:
                acc = part + btap_ref[...]   # folded depthwise bias, pre lane-tiled
            else:
                acc = acc + part
    G = jnp.tanh(acc)

    # ---- LSTM cell update (lane-dense packed layout, full-lane stores) --------
    c = c_ref[0]                                                      # (SE4, CP)
    cc = cf * c + ci * G
    ch = co * jnp.tanh(cc)
    cc_ref[0] = cc
    ch_ref[0] = ch


def gate_conv_lstm_cell(x, h, c, params, K, P):
    """x: (B, CIN, H, W); h, c: (B, CH, H, W) -> (ch, cc), each (B, CH, H, W)."""
    B, CIN, H, W = x.shape
    CH = h.shape[1]
    # center-tap reduction of the gate convs is only valid for odd K, 'same' pad
    assert K % 2 == 1 and P == (K - 1) // 2

    CD = CIN + CH
    Hp, Wp = H + 2 * P, W + 2 * P
    SP = Hp * Wp                 # zero-padded spatial extent (flattened)
    SE = H * Wp                  # extended output rows (valid + 2P garbage cols/row)
    S = H * W

    LANE = 128
    if CH <= LANE and LANE % CH == 0 and SE % (LANE // CH) == 0:
        PF = LANE // CH          # lane-packing factor (4 for CH=32)
    else:
        PF = 1
    CP = PF * CH
    SE4 = SE // PF

    LO = max(8, -(-P // 8) * 8)                           # sublane-aligned margin >= P
    LPAD4 = -(-(LO + SE4 + 2 * P * Wp + P) // 8) * 8      # wide-slab row count

    f32 = jnp.float32

    # ------------------------- inputs: channels-last, fused x|h -----------------
    def nhwc(t):
        return jnp.transpose(t, (0, 2, 3, 1)).astype(f32)

    xh = jnp.concatenate([nhwc(x), nhwc(h)], axis=-1)                 # (B,H,W,CD)
    xh_flat = xh.reshape(B, S, CD)                                    # pooling input
    fp = jnp.pad(xh, ((0, 0), (P, P), (P, P), (0, 0))).reshape(B, SP, CD)
    fpz = jnp.pad(fp, ((0, 0), (LO, LPAD4), (0, 0)))
    # wide slab: PF overlapping row-windows of the padded slab, side by side on
    # lanes -> the conv taps produce the lane-packed layout directly.
    wide = jnp.stack([fpz[:, q * SE4:q * SE4 + LPAD4, :] for q in range(PF)],
                     axis=2).reshape(B, LPAD4, PF * CD)

    # c in the extended layout, lane-packed to (B, SE4, CP)
    c_ext = jnp.pad(nhwc(c), ((0, 0), (0, 0), (P, P), (0, 0))).reshape(B, SE, CH)
    c_pk = jnp.transpose(c_ext.reshape(B, PF, SE4, CH),
                         (0, 2, 1, 3)).reshape(B, SE4, CP)

    # ------------------- weights: fold depthwise into pointwise -----------------
    def taps(wd):   # depthwise (C,1,K,K) -> (K*K, C)
        return jnp.transpose(wd[:, 0], (1, 2, 0)).reshape(K * K, wd.shape[0])

    wxd = taps(params['Wxc_d_w'])                                     # (KK, CIN)
    whd = taps(params['Whc_d_w'])                                     # (KK, CH)
    wxp = params['Wxc_p_w'][:, :, 0, 0].T                             # (CIN, CH)
    whp = params['Whc_p_w'][:, :, 0, 0].T                             # (CH, CH)
    wtap = jnp.concatenate([wxd[:, :, None] * wxp[None],
                            whd[:, :, None] * whp[None]], axis=1)     # (KK, CD, CH)
    eye = jnp.eye(PF, dtype=f32)
    wtap_bd = jnp.stack([jnp.kron(eye, wtap[t]) for t in range(K * K)])  # (KK,PF*CD,CP)

    btap = (params['Wxc_d_b'].reshape(1, CIN) @ wxp).astype(f32)      # (1, CH)
    btap_t = jnp.broadcast_to(btap.reshape(1, 1, CH), (1, PF, CH)).reshape(1, CP)

    # gates: stacked center-tap weights (i|f|o), lane-tiled to the packed layout
    def center(w):  # (O,I,K,K) -> (I,O)
        return w[:, :, P, P].T

    wg = jnp.concatenate([
        jnp.concatenate([center(params['Wxi_w']), center(params['Whi_w'])], 0),
        jnp.concatenate([center(params['Wxf_w']), center(params['Whf_w'])], 0),
        jnp.concatenate([center(params['Wxo_w']), center(params['Who_w'])], 0)],
        axis=1).astype(f32)                                           # (CD, 3*CH)
    bg = jnp.concatenate([params['Wxi_b'], params['Wxf_b'],
                          params['Wxo_b']]).reshape(1, 3 * CH).astype(f32)
    wg_t = jnp.broadcast_to(wg.reshape(CD, 3, 1, CH),
                            (CD, 3, PF, CH)).reshape(CD, 3 * CP)
    bg_t = jnp.broadcast_to(bg.reshape(1, 3, 1, CH),
                            (1, 3, PF, CH)).reshape(1, 3 * CP)

    kernel = functools.partial(_gate_conv_lstm_kernel,
                               K, P, Wp, SE4, PF, CP, LO, 1.0 / S)

    def fixed(shape):
        return pl.BlockSpec(shape, lambda b: (0,) * len(shape))

    ch_pk, cc_pk = pl.pallas_call(
        kernel,
        out_shape=(jax.ShapeDtypeStruct((B, SE4, CP), f32),
                   jax.ShapeDtypeStruct((B, SE4, CP), f32)),
        grid_spec=pltpu.PrefetchScalarGridSpec(
            num_scalar_prefetch=0,
            grid=(B,),
            in_specs=[
                pl.BlockSpec((1, S, CD), lambda b: (b, 0, 0)),
                pl.BlockSpec((1, LPAD4, PF * CD), lambda b: (b, 0, 0)),
                pl.BlockSpec((1, SE4, CP), lambda b: (b, 0, 0)),
                fixed((K * K, PF * CD, CP)),
                fixed((1, CP)),
                fixed((CD, 3 * CP)),
                fixed((1, 3 * CP)),
            ],
            out_specs=[pl.BlockSpec((1, SE4, CP), lambda b: (b, 0, 0)),
                       pl.BlockSpec((1, SE4, CP), lambda b: (b, 0, 0))],
        ),
        compiler_params=pltpu.CompilerParams(dimension_semantics=("parallel",)),
    )(xh_flat, wide, c_pk, wtap_bd, btap_t, wg_t, bg_t)

    def unpack(t_pk):  # (B, SE4, CP) -> (B, CH, H, W): drop the 2P garbage columns
        t = jnp.transpose(t_pk.reshape(B, SE4, PF, CH),
                          (0, 2, 1, 3)).reshape(B, H, Wp, CH)
        return jnp.transpose(t[:, :, P:P + W, :], (0, 3, 1, 2))

    return unpack(ch_pk), unpack(cc_pk)


# ------------------------------ pure-JAX reference --------------------------------
def _conv(x, w, b=None, padding=0, groups=1):
    out = lax.conv_general_dilated(
        x, w, window_strides=(1, 1),
        padding=[(padding, padding), (padding, padding)],
        dimension_numbers=('NCHW', 'OIHW', 'NCHW'),
        feature_group_count=groups)
    if b is not None:
        out = out + b[None, :, None, None]
    return out


def ref_forward(x, h, c, p, K, P):
    CIN, CH = x.shape[1], h.shape[1]
    xg = jnp.mean(x, axis=(2, 3), keepdims=True)
    hg = jnp.mean(h, axis=(2, 3), keepdims=True)
    ci = jax.nn.sigmoid(_conv(xg, p['Wxi_w'], p['Wxi_b'], P) + _conv(hg, p['Whi_w'], None, P))
    cf = jax.nn.sigmoid(_conv(xg, p['Wxf_w'], p['Wxf_b'], P) + _conv(hg, p['Whf_w'], None, P))
    co = jax.nn.sigmoid(_conv(xg, p['Wxo_w'], p['Wxo_b'], P) + _conv(hg, p['Who_w'], None, P))
    G = jnp.tanh(
        _conv(_conv(x, p['Wxc_d_w'], p['Wxc_d_b'], P, groups=CIN), p['Wxc_p_w'], None, 0)
        + _conv(_conv(h, p['Whc_d_w'], None, P, groups=CH), p['Whc_p_w'], None, 0))
    cc = cf * c + ci * G
    ch = co * jnp.tanh(cc)
    return ch, cc


# ------------------------------ deterministic params ------------------------------
def init_params(key, CIN, CH, K):
    def xavier(k, shape):
        fan_in = shape[1] * shape[2] * shape[3]
        fan_out = shape[0] * shape[2] * shape[3]
        std = (2.0 / (fan_in + fan_out)) ** 0.5
        return std * jax.random.normal(k, shape, jnp.float32)

    ks = jax.random.split(key, 16)
    p = {}
    p['Wxi_w'] = xavier(ks[0], (CH, CIN, K, K)); p['Wxi_b'] = 0.1 * jax.random.normal(ks[1], (CH,), jnp.float32)
    p['Whi_w'] = xavier(ks[2], (CH, CH, K, K))
    p['Wxf_w'] = xavier(ks[3], (CH, CIN, K, K)); p['Wxf_b'] = 0.1 * jax.random.normal(ks[4], (CH,), jnp.float32)
    p['Whf_w'] = xavier(ks[5], (CH, CH, K, K))
    p['Wxc_d_w'] = xavier(ks[6], (CIN, 1, K, K)); p['Wxc_d_b'] = 0.1 * jax.random.normal(ks[7], (CIN,), jnp.float32)
    p['Wxc_p_w'] = xavier(ks[8], (CH, CIN, 1, 1))
    p['Whc_d_w'] = xavier(ks[9], (CH, 1, K, K))
    p['Whc_p_w'] = xavier(ks[10], (CH, CH, 1, 1))
    p['Wxo_w'] = xavier(ks[11], (CH, CIN, K, K)); p['Wxo_b'] = 0.1 * jax.random.normal(ks[12], (CH,), jnp.float32)
    p['Who_w'] = xavier(ks[13], (CH, CH, K, K))
    return p


if __name__ == "__main__":
    B, CIN, CH, H, W, K = 2, 4, 32, 16, 16, 3
    P = (K - 1) // 2

    key = jax.random.PRNGKey(0)
    kx, kh, kc, kp = jax.random.split(key, 4)
    x = jax.random.normal(kx, (B, CIN, H, W), jnp.float32)
    h = jax.random.normal(kh, (B, CH, H, W), jnp.float32)
    c = jax.random.normal(kc, (B, CH, H, W), jnp.float32)
    params = init_params(kp, CIN, CH, K)

    ch_out, cc_out = gate_conv_lstm_cell(x, h, c, params, K, P)
    jax.block_until_ready((ch_out, cc_out))

    ch_ref, cc_ref = ref_forward(x, h, c, params, K, P)
    assert ch_out.shape == (B, CH, H, W) and cc_out.shape == (B, CH, H, W)
    assert float(jnp.max(jnp.abs(ch_out - ch_ref))) < 1e-3
    assert float(jnp.max(jnp.abs(cc_out - cc_ref))) < 1e-3
    print("KERNEL_OK")
</pallas_src>

<mosaic_0001>
module attributes {stable_mosaic.version = 11 : i64} {
  func.func @_gate_conv_lstm_kernel(%arg0: i32, %arg1: memref<1x256x36xf32, #tpu.memory_space<vmem>>, %arg2: memref<1x120x144xf32, #tpu.memory_space<vmem>>, %arg3: memref<1x72x128xf32, #tpu.memory_space<vmem>>, %arg4: memref<9x144x128xf32, #tpu.memory_space<vmem>>, %arg5: memref<1x128xf32, #tpu.memory_space<vmem>>, %arg6: memref<36x384xf32, #tpu.memory_space<vmem>>, %arg7: memref<1x384xf32, #tpu.memory_space<vmem>>, %arg8: memref<1x72x128xf32, #tpu.memory_space<vmem>>, %arg9: memref<1x72x128xf32, #tpu.memory_space<vmem>>) attributes {dimension_semantics = [#tpu.dimension_semantics<parallel>], iteration_bounds = array<i64: 2>, scalar_prefetch = 0 : i64, scratch_operands = 0 : i64, tpu.core_type = #tpu.core_type<tc>, window_params = [{transform_indices = @transform_0, window_bounds = array<i64: 1, 256, 36>}, {transform_indices = @transform_1, window_bounds = array<i64: 1, 120, 144>}, {transform_indices = @transform_2, window_bounds = array<i64: 1, 72, 128>}, {pipeline_mode = #tpu.pipeline_mode<synchronous>, transform_indices = @transform_3, window_bounds = array<i64: 9, 144, 128>}, {pipeline_mode = #tpu.pipeline_mode<synchronous>, transform_indices = @transform_4, window_bounds = array<i64: 1, 128>}, {pipeline_mode = #tpu.pipeline_mode<synchronous>, transform_indices = @transform_5, window_bounds = array<i64: 36, 384>}, {pipeline_mode = #tpu.pipeline_mode<synchronous>, transform_indices = @transform_6, window_bounds = array<i64: 1, 384>}, {transform_indices = @transform_7, window_bounds = array<i64: 1, 72, 128>}, {transform_indices = @transform_8, window_bounds = array<i64: 1, 72, 128>}]} {
    %c0 = arith.constant 0 : index
    %c0_0 = arith.constant 0 : index
    %c0_1 = arith.constant 0 : index
    %0 = vector.load %arg1[%c0, %c0_0, %c0_1] : memref<1x256x36xf32, #tpu.memory_space<vmem>>, vector<1x256x36xf32>
    %1 = vector.shape_cast %0 : vector<1x256x36xf32> to vector<256x36xf32>
    %cst = arith.constant dense<0.000000e+00> : vector<36xf32>
    %2 = vector.multi_reduction <add>, %1, %cst [0] : vector<256x36xf32> to vector<36xf32>
    %3 = vector.shape_cast %2 : vector<36xf32> to vector<1x36xf32>
    %cst_2 = arith.constant 3.906250e-03 : f32
    %4 = vector.broadcast %cst_2 : f32 to vector<1x36xf32>
    %5 = arith.mulf %3, %4 : vector<1x36xf32>
    %c0_3 = arith.constant 0 : index
    %c0_4 = arith.constant 0 : index
    %6 = vector.load %arg6[%c0_3, %c0_4] : memref<36x384xf32, #tpu.memory_space<vmem>>, vector<36x384xf32>
    %cst_5 = arith.constant dense<0.000000e+00> : vector<1x384xf32>
    %7 = tpu.matmul %5, %6, %cst_5 {dimension_numbers = #tpu.dot_dimension_numbers<[1], [0], [0], [1], [0, 0, 1, 1], [], []>} : vector<1x36xf32>, vector<36x384xf32>, vector<1x384xf32> -> vector<1x384xf32>
    %c0_6 = arith.constant 0 : index
    %c0_7 = arith.constant 0 : index
    %8 = vector.load %arg7[%c0_6, %c0_7] : memref<1x384xf32, #tpu.memory_space<vmem>>, vector<1x384xf32>
    %9 = arith.addf %7, %8 : vector<1x384xf32>
    %10 = arith.negf %9 : vector<1x384xf32>
    %11 = math.exp %10 : vector<1x384xf32>
    %cst_8 = arith.constant 1.000000e+00 : f32
    %12 = vector.broadcast %cst_8 : f32 to vector<1x384xf32>
    %13 = arith.addf %12, %11 : vector<1x384xf32>
    %14 = arith.divf %12, %13 : vector<1x384xf32>
    %15 = vector.extract_strided_slice %14 {offsets = [0, 0], sizes = [1, 128], strides = [1, 1]} : vector<1x384xf32> to vector<1x128xf32>
    %16 = vector.extract_strided_slice %14 {offsets = [0, 128], sizes = [1, 128], strides = [1, 1]} : vector<1x384xf32> to vector<1x128xf32>
    %17 = vector.extract_strided_slice %14 {offsets = [0, 256], sizes = [1, 128], strides = [1, 1]} : vector<1x384xf32> to vector<1x128xf32>
    %c0_9 = arith.constant 0 : index
    %c7 = arith.constant 7 : index
    %c0_10 = arith.constant 0 : index
    %18 = vector.load %arg2[%c0_9, %c7, %c0_10] : memref<1x120x144xf32, #tpu.memory_space<vmem>>, vector<1x72x144xf32>
    %19 = vector.shape_cast %18 : vector<1x72x144xf32> to vector<72x144xf32>
    %c0_11 = arith.constant 0 : index
    %c0_12 = arith.constant 0 : index
    %c0_13 = arith.constant 0 : index
    %20 = vector.load %arg4[%c0_11, %c0_12, %c0_13] : memref<9x144x128xf32, #tpu.memory_space<vmem>>, vector<1x144x128xf32>
    %21 = vector.shape_cast %20 : vector<1x144x128xf32> to vector<144x128xf32>
    %cst_14 = arith.constant dense<0.000000e+00> : vector<72x128xf32>
    %22 = tpu.matmul %19, %21, %cst_14 {dimension_numbers = #tpu.dot_dimension_numbers<[1], [0], [0], [1], [0, 0, 1, 1], [], []>} : vector<72x144xf32>, vector<144x128xf32>, vector<72x128xf32> -> vector<72x128xf32>
    %c0_15 = arith.constant 0 : index
    %c0_16 = arith.constant 0 : index
    %23 = vector.load %arg5[%c0_15, %c0_16] : memref<1x128xf32, #tpu.memory_space<vmem>>, vector<1x128xf32>
    %24 = vector.broadcast %23 : vector<1x128xf32> to vector<72x128xf32>
    %25 = arith.addf %22, %24 : vector<72x128xf32>
    %c0_17 = arith.constant 0 : index
    %c8 = arith.constant 8 : index
    %c0_18 = arith.constant 0 : index
    %26 = vector.load %arg2[%c0_17, %c8, %c0_18] : memref<1x120x144xf32, #tpu.memory_space<vmem>>, vector<1x72x144xf32>
    %27 = vector.shape_cast %26 : vector<1x72x144xf32> to vector<72x144xf32>
    %c1 = arith.constant 1 : index
    %c0_19 = arith.constant 0 : index
    %c0_20 = arith.constant 0 : index
    %28 = vector.load %arg4[%c1, %c0_19, %c0_20] : memref<9x144x128xf32, #tpu.memory_space<vmem>>, vector<1x144x128xf32>
    %29 = vector.shape_cast %28 : vector<1x144x128xf32> to vector<144x128xf32>
    %cst_21 = arith.constant dense<0.000000e+00> : vector<72x128xf32>
    %30 = tpu.matmul %27, %29, %cst_21 {dimension_numbers = #tpu.dot_dimension_numbers<[1], [0], [0], [1], [0, 0, 1, 1], [], []>} : vector<72x144xf32>, vector<144x128xf32>, vector<72x128xf32> -> vector<72x128xf32>
    %31 = arith.addf %25, %30 : vector<72x128xf32>
    %c0_22 = arith.constant 0 : index
    %c9 = arith.constant 9 : index
    %c0_23 = arith.constant 0 : index
    %32 = vector.load %arg2[%c0_22, %c9, %c0_23] : memref<1x120x144xf32, #tpu.memory_space<vmem>>, vector<1x72x144xf32>
    %33 = vector.shape_cast %32 : vector<1x72x144xf32> to vector<72x144xf32>
    %c2 = arith.constant 2 : index
    %c0_24 = arith.constant 0 : index
    %c0_25 = arith.constant 0 : index
    %34 = vector.load %arg4[%c2, %c0_24, %c0_25] : memref<9x144x128xf32, #tpu.memory_space<vmem>>, vector<1x144x128xf32>
    %35 = vector.shape_cast %34 : vector<1x144x128xf32> to vector<144x128xf32>
    %cst_26 = arith.constant dense<0.000000e+00> : vector<72x128xf32>
    %36 = tpu.matmul %33, %35, %cst_26 {dimension_numbers = #tpu.dot_dimension_numbers<[1], [0], [0], [1], [0, 0, 1, 1], [], []>} : vector<72x144xf32>, vector<144x128xf32>, vector<72x128xf32> -> vector<72x128xf32>
    %37 = arith.addf %31, %36 : vector<72x128xf32>
    %c0_27 = arith.constant 0 : index
    %c25 = arith.constant 25 : index
    %c0_28 = arith.constant 0 : index
    %38 = vector.load %arg2[%c0_27, %c25, %c0_28] : memref<1x120x144xf32, #tpu.memory_space<vmem>>, vector<1x72x144xf32>
    %39 = vector.shape_cast %38 : vector<1x72x144xf32> to vector<72x144xf32>
    %c3 = arith.constant 3 : index
    %c0_29 = arith.constant 0 : index
    %c0_30 = arith.constant 0 : index
    %40 = vector.load %arg4[%c3, %c0_29, %c0_30] : memref<9x144x128xf32, #tpu.memory_space<vmem>>, vector<1x144x128xf32>
    %41 = vector.shape_cast %40 : vector<1x144x128xf32> to vector<144x128xf32>
    %cst_31 = arith.constant dense<0.000000e+00> : vector<72x128xf32>
    %42 = tpu.matmul %39, %41, %cst_31 {dimension_numbers = #tpu.dot_dimension_numbers<[1], [0], [0], [1], [0, 0, 1, 1], [], []>} : vector<72x144xf32>, vector<144x128xf32>, vector<72x128xf32> -> vector<72x128xf32>
    %43 = arith.addf %37, %42 : vector<72x128xf32>
    %c0_32 = arith.constant 0 : index
    %c26 = arith.constant 26 : index
    %c0_33 = arith.constant 0 : index
    %44 = vector.load %arg2[%c0_32, %c26, %c0_33] : memref<1x120x144xf32, #tpu.memory_space<vmem>>, vector<1x72x144xf32>
    %45 = vector.shape_cast %44 : vector<1x72x144xf32> to vector<72x144xf32>
    %c4 = arith.constant 4 : index
    %c0_34 = arith.constant 0 : index
    %c0_35 = arith.constant 0 : index
    %46 = vector.load %arg4[%c4, %c0_34, %c0_35] : memref<9x144x128xf32, #tpu.memory_space<vmem>>, vector<1x144x128xf32>
    %47 = vector.shape_cast %46 : vector<1x144x128xf32> to vector<144x128xf32>
    %cst_36 = arith.constant dense<0.000000e+00> : vector<72x128xf32>
    %48 = tpu.matmul %45, %47, %cst_36 {dimension_numbers = #tpu.dot_dimension_numbers<[1], [0], [0], [1], [0, 0, 1, 1], [], []>} : vector<72x144xf32>, vector<144x128xf32>, vector<72x128xf32> -> vector<72x128xf32>
    %49 = arith.addf %43, %48 : vector<72x128xf32>
    %c0_37 = arith.constant 0 : index
    %c27 = arith.constant 27 : index
    %c0_38 = arith.constant 0 : index
    %50 = vector.load %arg2[%c0_37, %c27, %c0_38] : memref<1x120x144xf32, #tpu.memory_space<vmem>>, vector<1x72x144xf32>
    %51 = vector.shape_cast %50 : vector<1x72x144xf32> to vector<72x144xf32>
    %c5 = arith.constant 5 : index
    %c0_39 = arith.constant 0 : index
    %c0_40 = arith.constant 0 : index
    %52 = vector.load %arg4[%c5, %c0_39, %c0_40] : memref<9x144x128xf32, #tpu.memory_space<vmem>>, vector<1x144x128xf32>
    %53 = vector.shape_cast %52 : vector<1x144x128xf32> to vector<144x128xf32>
    %cst_41 = arith.constant dense<0.000000e+00> : vector<72x128xf32>
    %54 = tpu.matmul %51, %53, %cst_41 {dimension_numbers = #tpu.dot_dimension_numbers<[1], [0], [0], [1], [0, 0, 1, 1], [], []>} : vector<72x144xf32>, vector<144x128xf32>, vector<72x128xf32> -> vector<72x128xf32>
    %55 = arith.addf %49, %54 : vector<72x128xf32>
    %c0_42 = arith.constant 0 : index
    %c43 = arith.constant 43 : index
    %c0_43 = arith.constant 0 : index
    %56 = vector.load %arg2[%c0_42, %c43, %c0_43] : memref<1x120x144xf32, #tpu.memory_space<vmem>>, vector<1x72x144xf32>
    %57 = vector.shape_cast %56 : vector<1x72x144xf32> to vector<72x144xf32>
    %c6 = arith.constant 6 : index
    %c0_44 = arith.constant 0 : index
    %c0_45 = arith.constant 0 : index
    %58 = vector.load %arg4[%c6, %c0_44, %c0_45] : memref<9x144x128xf32, #tpu.memory_space<vmem>>, vector<1x144x128xf32>
    %59 = vector.shape_cast %58 : vector<1x144x128xf32> to vector<144x128xf32>
    %cst_46 = arith.constant dense<0.000000e+00> : vector<72x128xf32>
    %60 = tpu.matmul %57, %59, %cst_46 {dimension_numbers = #tpu.dot_dimension_numbers<[1], [0], [0], [1], [0, 0, 1, 1], [], []>} : vector<72x144xf32>, vector<144x128xf32>, vector<72x128xf32> -> vector<72x128xf32>
    %61 = arith.addf %55, %60 : vector<72x128xf32>
    %c0_47 = arith.constant 0 : index
    %c44 = arith.constant 44 : index
    %c0_48 = arith.constant 0 : index
    %62 = vector.load %arg2[%c0_47, %c44, %c0_48] : memref<1x120x144xf32, #tpu.memory_space<vmem>>, vector<1x72x144xf32>
    %63 = vector.shape_cast %62 : vector<1x72x144xf32> to vector<72x144xf32>
    %c7_49 = arith.constant 7 : index
    %c0_50 = arith.constant 0 : index
    %c0_51 = arith.constant 0 : index
    %64 = vector.load %arg4[%c7_49, %c0_50, %c0_51] : memref<9x144x128xf32, #tpu.memory_space<vmem>>, vector<1x144x128xf32>
    %65 = vector.shape_cast %64 : vector<1x144x128xf32> to vector<144x128xf32>
    %cst_52 = arith.constant dense<0.000000e+00> : vector<72x128xf32>
    %66 = tpu.matmul %63, %65, %cst_52 {dimension_numbers = #tpu.dot_dimension_numbers<[1], [0], [0], [1], [0, 0, 1, 1], [], []>} : vector<72x144xf32>, vector<144x128xf32>, vector<72x128xf32> -> vector<72x128xf32>
    %67 = arith.addf %61, %66 : vector<72x128xf32>
    %c0_53 = arith.constant 0 : index
    %c45 = arith.constant 45 : index
    %c0_54 = arith.constant 0 : index
    %68 = vector.load %arg2[%c0_53, %c45, %c0_54] : memref<1x120x144xf32, #tpu.memory_space<vmem>>, vector<1x72x144xf32>
    %69 = vector.shape_cast %68 : vector<1x72x144xf32> to vector<72x144xf32>
    %c8_55 = arith.constant 8 : index
    %c0_56 = arith.constant 0 : index
    %c0_57 = arith.constant 0 : index
    %70 = vector.load %arg4[%c8_55, %c0_56, %c0_57] : memref<9x144x128xf32, #tpu.memory_space<vmem>>, vector<1x144x128xf32>
    %71 = vector.shape_cast %70 : vector<1x144x128xf32> to vector<144x128xf32>
    %cst_58 = arith.constant dense<0.000000e+00> : vector<72x128xf32>
    %72 = tpu.matmul %69, %71, %cst_58 {dimension_numbers = #tpu.dot_dimension_numbers<[1], [0], [0], [1], [0, 0, 1, 1], [], []>} : vector<72x144xf32>, vector<144x128xf32>, vector<72x128xf32> -> vector<72x128xf32>
    %73 = arith.addf %67, %72 : vector<72x128xf32>
    %74 = math.tanh %73 : vector<72x128xf32>
    %c0_59 = arith.constant 0 : index
    %c0_60 = arith.constant 0 : index
    %c0_61 = arith.constant 0 : index
    %75 = vector.load %arg3[%c0_59, %c0_60, %c0_61] : memref<1x72x128xf32, #tpu.memory_space<vmem>>, vector<1x72x128xf32>
    %76 = vector.shape_cast %75 : vector<1x72x128xf32> to vector<72x128xf32>
    %77 = vector.broadcast %16 : vector<1x128xf32> to vector<72x128xf32>
    %78 = arith.mulf %77, %76 : vector<72x128xf32>
    %79 = vector.broadcast %15 : vector<1x128xf32> to vector<72x128xf32>
    %80 = arith.mulf %79, %74 : vector<72x128xf32>
    %81 = arith.addf %78, %80 : vector<72x128xf32>
    %82 = math.tanh %81 : vector<72x128xf32>
    %83 = vector.broadcast %17 : vector<1x128xf32> to vector<72x128xf32>
    %84 = arith.mulf %83, %82 : vector<72x128xf32>
    %c0_62 = arith.constant 0 : index
    %c0_63 = arith.constant 0 : index
    %c0_64 = arith.constant 0 : index
    %85 = vector.load %arg9[%c0_62, %c0_63, %c0_64] : memref<1x72x128xf32, #tpu.memory_space<vmem>>, vector<1x72x128xf32>
    %86 = vector.shape_cast %85 : vector<1x72x128xf32> to vector<72x128xf32>
    %87 = vector.shape_cast %81 : vector<72x128xf32> to vector<1x72x128xf32>
    tpu.vector_store %arg9[%c0_62, %c0_63, %c0_64], %87 {strides = array<i32>} : memref<1x72x128xf32, #tpu.memory_space<vmem>>, vector<1x72x128xf32>,
    %c0_65 = arith.constant 0 : index
    %c0_66 = arith.constant 0 : index
    %c0_67 = arith.constant 0 : index
    %88 = vector.load %arg8[%c0_65, %c0_66, %c0_67] : memref<1x72x128xf32, #tpu.memory_space<vmem>>, vector<1x72x128xf32>
    %89 = vector.shape_cast %88 : vector<1x72x128xf32> to vector<72x128xf32>
    %90 = vector.shape_cast %84 : vector<72x128xf32> to vector<1x72x128xf32>
    tpu.vector_store %arg8[%c0_65, %c0_66, %c0_67], %90 {strides = array<i32>} : memref<1x72x128xf32, #tpu.memory_space<vmem>>, vector<1x72x128xf32>,
    return
  }
  func.func @transform_0(%arg0: i32) -> (i32, i32, i32) {
    %c0_i32 = arith.constant 0 : i32
    %c0_i32_0 = arith.constant 0 : i32
    %c0_i32_1 = arith.constant 0 : i32
    return %arg0, %c0_i32, %c0_i32_0 : i32, i32, i32
  }
  func.func @transform_1(%arg0: i32) -> (i32, i32, i32) {
    %c0_i32 = arith.constant 0 : i32
    %c0_i32_0 = arith.constant 0 : i32
    %c0_i32_1 = arith.constant 0 : i32
    return %arg0, %c0_i32, %c0_i32_0 : i32, i32, i32
  }
  func.func @transform_2(%arg0: i32) -> (i32, i32, i32) {
    %c0_i32 = arith.constant 0 : i32
    %c0_i32_0 = arith.constant 0 : i32
    %c0_i32_1 = arith.constant 0 : i32
    return %arg0, %c0_i32, %c0_i32_0 : i32, i32, i32
  }
  func.func @transform_3(%arg0: i32) -> (i32, i32, i32) {
    %c0_i32 = arith.constant 0 : i32
    %c0_i32_0 = arith.constant 0 : i32
    %c0_i32_1 = arith.constant 0 : i32
    %c0_i32_2 = arith.constant 0 : i32
    return %c0_i32, %c0_i32_0, %c0_i32_1 : i32, i32, i32
  }
  func.func @transform_4(%arg0: i32) -> (i32, i32) {
    %c0_i32 = arith.constant 0 : i32
    %c0_i32_0 = arith.constant 0 : i32
    %c0_i32_1 = arith.constant 0 : i32
    return %c0_i32, %c0_i32_0 : i32, i32
  }
  func.func @transform_5(%arg0: i32) -> (i32, i32) {
    %c0_i32 = arith.constant 0 : i32
    %c0_i32_0 = arith.constant 0 : i32
    %c0_i32_1 = arith.constant 0 : i32
    return %c0_i32, %c0_i32_0 : i32, i32
  }
  func.func @transform_6(%arg0: i32) -> (i32, i32) {
    %c0_i32 = arith.constant 0 : i32
    %c0_i32_0 = arith.constant 0 : i32
    %c0_i32_1 = arith.constant 0 : i32
    return %c0_i32, %c0_i32_0 : i32, i32
  }
  func.func @transform_7(%arg0: i32) -> (i32, i32, i32) {
    %c0_i32 = arith.constant 0 : i32
    %c0_i32_0 = arith.constant 0 : i32
    %c0_i32_1 = arith.constant 0 : i32
    return %arg0, %c0_i32, %c0_i32_0 : i32, i32, i32
  }
  func.func @transform_8(%arg0: i32) -> (i32, i32, i32) {
    %c0_i32 = arith.constant 0 : i32
    %c0_i32_0 = arith.constant 0 : i32
    %c0_i32_1 = arith.constant 0 : i32
    return %arg0, %c0_i32, %c0_i32_0 : i32, i32, i32
  }
}

</mosaic_0001>

<llo_original>
// kernel: tpu_custom_call.1
$region0: #{tpu_custom_call.1}
  #allocation0 [shape = 'u32[]', space=smem, size = 0x4, offset = 0x4, fixed_abs, tag = 'smem constant byte address 0x4 - core index']
  #allocation1 [shape = 'u32[144,128]{1,0:T(1,128)}', space=vmem, size = 0x12000, scoped, tag = 'internal scratch']
  %s0 = inlined_call_operand.vmem [shape: f32[2,256,36], index: 0, kind: input, shape index: {}]
  %s1 = inlined_call_operand.vmem [shape: f32[2,120,144], index: 1, kind: input, shape index: {}]
  %s2 = inlined_call_operand.hbm [shape: f32[2,72,128], index: 2, kind: input, shape index: {}]
  %s3 = inlined_call_operand.vmem [shape: f32[9,144,128], index: 3, kind: input, shape index: {}]
  %s4 = inlined_call_operand.vmem [shape: f32[1,128], index: 4, kind: input, shape index: {}]
  %s5 = inlined_call_operand.vmem [shape: f32[36,384], index: 5, kind: input, shape index: {}]
  %s6 = inlined_call_operand.vmem [shape: f32[1,384], index: 6, kind: input, shape index: {}]
  %s7 = inlined_call_operand.hbm [shape: f32[2,72,128], index: 7, kind: output, shape index: {0}]
  %s8 = inlined_call_operand.hbm [shape: f32[2,72,128], index: 8, kind: output, shape index: {1}]
  %9 = xla_tuple %s7, %s8
  %s10 = sld [smem:[#allocation0]]
  $region73: #{tpu_custom_call.1} parent=0
    _
  %s12 = ssub.s32 1, %s10
  %s13 = scalar_select 0, %s12, %s10
  $region1: #{tpu_custom_call.1} parent=0
    #allocation2 [shape = 'u8[73728]{0}', space=vmem, size = 0x12000, scoped, tag = 'input window, operand 2']
    #allocation3 [shape = 's32[2]{0}', space=sflag, size = 0x8, scoped, tag = 'scoped memory for tpu_custom_call.1']
    #allocation4 [shape = 's32[2]{0}', space=sflag, size = 0x8, scoped, tag = 'scoped memory for tpu_custom_call.1']
    #allocation5 [shape = 'u8[73728]{0}', space=vmem, size = 0x12000, scoped, tag = 'output window, operand 0']
    #allocation6 [shape = 'u8[73728]{0}', space=vmem, size = 0x12000, scoped, tag = 'output window, operand 1']
    #allocation7 [shape = 's32[2]{0}', space=sflag, size = 0x8, scoped, tag = 'scoped memory for tpu_custom_call.1']
    %14 = vsyncpa [#allocation3], 0
    %s15 = scalar_lea.sflag [#allocation3], 1
    %16 = vsyncpa %s15, 0
    %17 = vsyncpa [#allocation4], 0
    %s18 = scalar_lea.sflag [#allocation4], 1
    %19 = vsyncpa %s18, 0
    %20 = vsyncpa [#allocation7], 0
    %s21 = scalar_lea.sflag [#allocation7], 1
    %22 = vsyncpa %s21, 0
    loop: start=0, step=1, limit=4
    $region2: #{tpu_custom_call.1} parent=1 // loop_pre_header
      _
    $region3: #{tpu_custom_call.1} parent=1 // loop_header
      %s24 = sphi 0, %s28
      %p25 = scmp.ge.s32.totalorder %s24, 4
      %s34 = sphi 0, %s36
      %s37 = sphi 0, %s34
      %s38 = sphi 0, %s37
      %s54 = sphi 0, %s38
      %s60 = sphi 0, %s62
      %s63 = sphi 0, %s60
      %s64 = sphi 0, %s63
      %s80 = sphi 0, %s64
      %s86 = sphi 0, %s88
      %s89 = sphi 0, %s86
      %s90 = sphi 0, %s89
      %s106 = sphi 0, %s90
      %s110 = sphi 0, %s110
      %s112 = sphi 0, %s110
      %s113 = sphi 0, %s112
      %s127 = sphi 0, %s113
      %s131 = sphi 0, %s131
      %s133 = sphi 0, %s131
      %s134 = sphi 0, %s133
      %s148 = sphi 0, %s134
      %s152 = sphi 0, %s152
      %s154 = sphi 0, %s152
      %s155 = sphi 0, %s154
      %s169 = sphi 0, %s155
      %s173 = sphi 0, %s173
      %s175 = sphi 0, %s173
      %s176 = sphi 0, %s175
      %s190 = sphi 0, %s176
      %s196 = sphi 0, %s198
      %s199 = sphi 0, %s196
      %s200 = sphi 0, %s199
      %s216 = sphi 0, %s200
      %s222 = sphi 0, %s224
      %s225 = sphi 0, %s222
      %s226 = sphi 0, %s225
      %s242 = sphi 0, %s226
    $region4: #{tpu_custom_call.1} parent=1 // loop_header_branch
      %27 = sbr.rel (%p25) target = $region8
    $region5: #{tpu_custom_call.1} parent=1 // loop_body
      %s29 = ssub.s32 %s24, 1
      %s30 = ssub.s32 %s24, 2
      %s31 = sadd.s32 %s24, 1
      %s32 = ssub.s32 %s24, %s31
      %p33 = scmp.eq.s32.totalorder %s32, 0
      %s35 = sadd.s32 %s34, 1
      %s36 = scalar_select %p33, %s34, %s35
      %p39 = pneg %p33
      %p40 = scmp.eq.s32.totalorder %s24, 1
      %p41 = por %p39, %p40
      %p42 = scmp.ne.s32.totalorder %s34, %s37
      %p43 = scmp.eq.s32.totalorder %s24, 0
      %p44 = por %p42, %p43
      %p45 = scmp.ne.s32.totalorder %s34, %s37
      %p46 = scmp.eq.s32.totalorder %s29, 1
      %p47 = por %p45, %p46
      %p48 = scmp.ne.s32.totalorder %s37, %s38
      %p49 = scmp.eq.s32.totalorder %s29, 0
      %p50 = por %p48, %p49
      %p51 = scmp.ne.s32.totalorder %s37, %s38
      %p52 = scmp.eq.s32.totalorder %s30, 1
      %p53 = por %p51, %p52
      %p55 = scmp.ne.s32.totalorder %s38, %s54
      %p56 = scmp.eq.s32.totalorder %s30, 0
      %p57 = por %p55, %p56
      %s58 = ssub.s32 %s24, %s31
      %p59 = scmp.eq.s32.totalorder %s58, 0
      %s61 = sadd.s32 %s60, 1
      %s62 = scalar_select %p59, %s60, %s61
      %p65 = pneg %p59
      %p66 = scmp.eq.s32.totalorder %s24, 1
      %p67 = por %p65, %p66
      %p68 = scmp.ne.s32.totalorder %s60, %s63
      %p69 = scmp.eq.s32.totalorder %s24, 0
      %p70 = por %p68, %p69
      %p71 = scmp.ne.s32.totalorder %s60, %s63
      %p72 = scmp.eq.s32.totalorder %s29, 1
      %p73 = por %p71, %p72
      %p74 = scmp.ne.s32.totalorder %s63, %s64
      %p75 = scmp.eq.s32.totalorder %s29, 0
      %p76 = por %p74, %p75
      %p77 = scmp.ne.s32.totalorder %s63, %s64
      %p78 = scmp.eq.s32.totalorder %s30, 1
      %p79 = por %p77, %p78
      %p81 = scmp.ne.s32.totalorder %s64, %s80
      %p82 = scmp.eq.s32.totalorder %s30, 0
      %p83 = por %p81, %p82
      %s84 = ssub.s32 %s24, %s31
      %p85 = scmp.eq.s32.totalorder %s84, 0
      %s87 = sadd.s32 %s86, 1
      %s88 = scalar_select %p85, %s86, %s87
      %p91 = pneg %p85
      %p92 = scmp.eq.s32.totalorder %s24, 1
      %p93 = por %p91, %p92
      %p94 = scmp.ne.s32.totalorder %s86, %s89
      %p95 = scmp.eq.s32.totalorder %s24, 0
      %p96 = por %p94, %p95
      %p97 = scmp.ne.s32.totalorder %s86, %s89
      %p98 = scmp.eq.s32.totalorder %s29, 1
      %p99 = por %p97, %p98
      %p100 = scmp.ne.s32.totalorder %s89, %s90
      %p101 = scmp.eq.s32.totalorder %s29, 0
      %p102 = por %p100, %p101
      %p103 = scmp.ne.s32.totalorder %s89, %s90
      %p104 = scmp.eq.s32.totalorder %s30, 1
      %p105 = por %p103, %p104
      %p107 = scmp.ne.s32.totalorder %s90, %s106
      %p108 = scmp.eq.s32.totalorder %s30, 0
      %p109 = por %p107, %p108
      %s111 = sadd.s32 %s110, 1
      %p114 = scmp.eq.s32.totalorder %s24, 1
      %p115 = scmp.ne.s32.totalorder %s110, %s112
      %p116 = scmp.eq.s32.totalorder %s24, 0
      %p117 = por %p115, %p116
      %p118 = scmp.ne.s32.totalorder %s110, %s112
      %p119 = scmp.eq.s32.totalorder %s29, 1
      %p120 = por %p118, %p119
      %p121 = scmp.ne.s32.totalorder %s112, %s113
      %p122 = scmp.eq.s32.totalorder %s29, 0
      %p123 = por %p121, %p122
      %p124 = scmp.ne.s32.totalorder %s112, %s113
      %p125 = scmp.eq.s32.totalorder %s30, 1
      %p126 = por %p124, %p125
      %p128 = scmp.ne.s32.totalorder %s113, %s127
      %p129 = scmp.eq.s32.totalorder %s30, 0
      %p130 = por %p128, %p129
      %s132 = sadd.s32 %s131, 1
      %p135 = scmp.eq.s32.totalorder %s24, 1
      %p136 = scmp.ne.s32.totalorder %s131, %s133
      %p137 = scmp.eq.s32.totalorder %s24, 0
      %p138 = por %p136, %p137
      %p139 = scmp.ne.s32.totalorder %s131, %s133
      %p140 = scmp.eq.s32.totalorder %s29, 1
      %p141 = por %p139, %p140
      %p142 = scmp.ne.s32.totalorder %s133, %s134
      %p143 = scmp.eq.s32.totalorder %s29, 0
      %p144 = por %p142, %p143
      %p145 = scmp.ne.s32.totalorder %s133, %s134
      %p146 = scmp.eq.s32.totalorder %s30, 1
      %p147 = por %p145, %p146
      %p149 = scmp.ne.s32.totalorder %s134, %s148
      %p150 = scmp.eq.s32.totalorder %s30, 0
      %p151 = por %p149, %p150
      %s153 = sadd.s32 %s152, 1
      %p156 = scmp.eq.s32.totalorder %s24, 1
      %p157 = scmp.ne.s32.totalorder %s152, %s154
      %p158 = scmp.eq.s32.totalorder %s24, 0
      %p159 = por %p157, %p158
      %p160 = scmp.ne.s32.totalorder %s152, %s154
      %p161 = scmp.eq.s32.totalorder %s29, 1
      %p162 = por %p160, %p161
      %p163 = scmp.ne.s32.totalorder %s154, %s155
      %p164 = scmp.eq.s32.totalorder %s29, 0
      %p165 = por %p163, %p164
      %p166 = scmp.ne.s32.totalorder %s154, %s155
      %p167 = scmp.eq.s32.totalorder %s30, 1
      %p168 = por %p166, %p167
      %p170 = scmp.ne.s32.totalorder %s155, %s169
      %p171 = scmp.eq.s32.totalorder %s30, 0
      %p172 = por %p170, %p171
      %s174 = sadd.s32 %s173, 1
      %p177 = scmp.eq.s32.totalorder %s24, 1
      %p178 = scmp.ne.s32.totalorder %s173, %s175
      %p179 = scmp.eq.s32.totalorder %s24, 0
      %p180 = por %p178, %p179
      %p181 = scmp.ne.s32.totalorder %s173, %s175
      %p182 = scmp.eq.s32.totalorder %s29, 1
      %p183 = por %p181, %p182
      %p184 = scmp.ne.s32.totalorder %s175, %s176
      %p185 = scmp.eq.s32.totalorder %s29, 0
      %p186 = por %p184, %p185
      %p187 = scmp.ne.s32.totalorder %s175, %s176
      %p188 = scmp.eq.s32.totalorder %s30, 1
      %p189 = por %p187, %p188
      %p191 = scmp.ne.s32.totalorder %s176, %s190
      %p192 = scmp.eq.s32.totalorder %s30, 0
      %p193 = por %p191, %p192
      %s194 = ssub.s32 %s24, %s31
      %p195 = scmp.eq.s32.totalorder %s194, 0
      %s197 = sadd.s32 %s196, 1
      %s198 = scalar_select %p195, %s196, %s197
      %p201 = pneg %p195
      %p202 = scmp.eq.s32.totalorder %s24, 1
      %p203 = por %p201, %p202
      %p204 = scmp.ne.s32.totalorder %s196, %s199
      %p205 = scmp.eq.s32.totalorder %s24, 0
      %p206 = por %p204, %p205
      %p207 = scmp.ne.s32.totalorder %s196, %s199
      %p208 = scmp.eq.s32.totalorder %s29, 1
      %p209 = por %p207, %p208
      %p210 = scmp.ne.s32.totalorder %s199, %s200
      %p211 = scmp.eq.s32.totalorder %s29, 0
      %p212 = por %p210, %p211
      %p213 = scmp.ne.s32.totalorder %s199, %s200
      %p214 = scmp.eq.s32.totalorder %s30, 1
      %p215 = por %p213, %p214
      %p217 = scmp.ne.s32.totalorder %s200, %s216
      %p218 = scmp.eq.s32.totalorder %s30, 0
      %p219 = por %p217, %p218
      %s220 = ssub.s32 %s24, %s31
      %p221 = scmp.eq.s32.totalorder %s220, 0
      %s223 = sadd.s32 %s222, 1
      %s224 = scalar_select %p221, %s222, %s223
      %p227 = pneg %p221
      %p228 = scmp.eq.s32.totalorder %s24, 1
      %p229 = por %p227, %p228
      %p230 = scmp.ne.s32.totalorder %s222, %s225
      %p231 = scmp.eq.s32.totalorder %s24, 0
      %p232 = por %p230, %p231
      %p233 = scmp.ne.s32.totalorder %s222, %s225
      %p234 = scmp.eq.s32.totalorder %s29, 1
      %p235 = por %p233, %p234
      %p236 = scmp.ne.s32.totalorder %s225, %s226
      %p237 = scmp.eq.s32.totalorder %s29, 0
      %p238 = por %p236, %p237
      %p239 = scmp.ne.s32.totalorder %s225, %s226
      %p240 = scmp.eq.s32.totalorder %s30, 1
      %p241 = por %p239, %p240
      %p243 = scmp.ne.s32.totalorder %s226, %s242
      %p244 = scmp.eq.s32.totalorder %s30, 0
      %p245 = por %p243, %p244
      %p246 = scmp.le.s32.totalorder 1, %s24
      %p247 = scmp.lt.s32.totalorder %s24, 3
      %p248 = pnand %p246, %p247
      %p249 = pneg %p248
      // Predicated region
      $region9: #{tpu_custom_call.1} parent=5 // pred_check
        _
      $region10: #{tpu_custom_call.1} parent=5 // pred_check_branch
        %251 = sbr.rel (%p248) target = $region12
      $region11: #{tpu_custom_call.1} parent=5 // pred_region
        %s252 = ssub.s32 %s24, 1
        // Predicated region
        $region13: #{tpu_custom_call.1} parent=11 // pred_check
          %p253 = pneg %p123
        $region14: #{tpu_custom_call.1} parent=11 // pred_check_branch
          %255 = sbr.rel (%p253) target = $region16
        $region15: #{tpu_custom_call.1} parent=11 // pred_region
          _
        $region16: #{tpu_custom_call.1} parent=11 // pred_fallthru
          _
        // Predicated region
        $region17: #{tpu_custom_call.1} parent=11 // pred_check
          %p256 = pneg %p144
        $region18: #{tpu_custom_call.1} parent=11 // pred_check_branch
          %258 = sbr.rel (%p256) target = $region20
        $region19: #{tpu_custom_call.1} parent=11 // pred_region
          _
        $region20: #{tpu_custom_call.1} parent=11 // pred_fallthru
          _
        // Predicated region
        $region21: #{tpu_custom_call.1} parent=11 // pred_check
          %p259 = pneg %p165
        $region22: #{tpu_custom_call.1} parent=11 // pred_check_branch
          %261 = sbr.rel (%p259) target = $region24
        $region23: #{tpu_custom_call.1} parent=11 // pred_region
          _
        $region24: #{tpu_custom_call.1} parent=11 // pred_fallthru
          _
        // Predicated region
        $region25: #{tpu_custom_call.1} parent=11 // pred_check
          %p262 = pneg %p186
        $region26: #{tpu_custom_call.1} parent=11 // pred_check_branch
          %264 = sbr.rel (%p262) target = $region28
        $region27: #{tpu_custom_call.1} parent=11 // pred_region
          _
        $region28: #{tpu_custom_call.1} parent=11 // pred_fallthru
          _
      $region12: #{tpu_custom_call.1} parent=5 // pred_fallthru
        _
      %p265 = scmp.lt.s32.totalorder %s24, 2
      // Predicated region
      $region29: #{tpu_custom_call.1} parent=5 // pred_check
        %p266 = pneg %p265
      $region30: #{tpu_custom_call.1} parent=5 // pred_check_branch
        %268 = sbr.rel (%p266) target = $region32
      $region31: #{tpu_custom_call.1} parent=5 // pred_region
        // Predicated region
        $region33: #{tpu_custom_call.1} parent=31 // pred_check
          %p269 = pneg %p44
        $region34: #{tpu_custom_call.1} parent=31 // pred_check_branch
          %271 = sbr.rel (%p269) target = $region36
        $region35: #{tpu_custom_call.1} parent=31 // pred_region
          %p272 = scmp.lt.s32.totalorder %s24, 1
          %s273 = scalar_select %p272, %s24, 1
          %s274 = smul.addr %s273, 32
          %s275 = smul.addr %s274, 8
          %s276 = scalar_lea.vmem %s0, %s275
        $region36: #{tpu_custom_call.1} parent=31 // pred_fallthru
          _
        // Predicated region
        $region37: #{tpu_custom_call.1} parent=31 // pred_check
          %p277 = pneg %p70
        $region38: #{tpu_custom_call.1} parent=31 // pred_check_branch
          %279 = sbr.rel (%p277) target = $region40
        $region39: #{tpu_custom_call.1} parent=31 // pred_region
          %p280 = scmp.lt.s32.totalorder %s24, 1
          %s281 = scalar_select %p280, %s24, 1
          %s282 = smul.addr %s281, 30
          %s283 = smul.addr %s282, 8
          %s284 = scalar_lea.vmem %s1, %s283
        $region40: #{tpu_custom_call.1} parent=31 // pred_fallthru
          _
        // Predicated region
        $region41: #{tpu_custom_call.1} parent=31 // pred_check
          %p285 = pneg %p96
        $region42: #{tpu_custom_call.1} parent=31 // pred_check_branch
          %287 = sbr.rel (%p285) target = $region44
        $region43: #{tpu_custom_call.1} parent=31 // pred_region
          %s288 = sand.u32 %s86, 1
          %s289 = scalar_lea.sflag [#allocation3], %s288
          %s290 = sand.u32 %s86, 1
          %s291 = smul.addr %s290, 72
          %s292 = scalar_lea.vmem [#allocation2], %s291
          %s294 = ssub.s32 1152, 1152
          %295 = vsyncadd %s289, %s294
          %s296 = smul.addr %s24, 9
          %s297 = smul.addr %s296, 128
          %s298 = scalar_lea.hbm %s2, %s297
          %s299 = sshll.u32 %s292, 4
          %s300 = int_to_ptr.vmem [resolvable:$true] %s299
          %305 = dma.hbm_to_vmem [thread:$0]  %s298, 1152, %s300, %s289, 128, 128, 8
        $region44: #{tpu_custom_call.1} parent=31 // pred_fallthru
          _
      $region32: #{tpu_custom_call.1} parent=5 // pred_fallthru
        _
      %p306 = scmp.le.s32.totalorder 1, %s24
      %p307 = scmp.lt.s32.totalorder %s24, 3
      %p308 = pnand %p306, %p307
      %p309 = pneg %p308
      // Predicated region
      $region45: #{tpu_custom_call.1} parent=5 // pred_check
        _
      $region46: #{tpu_custom_call.1} parent=5 // pred_check_branch
        %311 = sbr.rel (%p308) target = $region48
      $region47: #{tpu_custom_call.1} parent=5 // pred_region
        %s312 = ssub.s32 %s24, 1
        %s313 = sand.u32 %s89, 1
        %s314 = scalar_lea.sflag [#allocation3], %s313
        %s315 = sand.u32 %s89, 1
        %s316 = smul.addr %s315, 72
        %s317 = scalar_lea.vmem [#allocation2], %s316
        // Predicated region
        $region49: #{tpu_custom_call.1} parent=47 // pred_check
          %p318 = pneg %p102
        $region50: #{tpu_custom_call.1} parent=47 // pred_check_branch
          %320 = sbr.rel (%p318) target = $region52
        $region51: #{tpu_custom_call.1} parent=47 // pred_region
          %321 = dma.done %s314, 1152
        $region52: #{tpu_custom_call.1} parent=47 // pred_fallthru
          _
        %p322 = scmp.lt.s32.totalorder %s29, 1
        %s323 = scalar_select %p322, %s29, 1
        %s324 = smul.addr %s323, 32
        %s325 = smul.addr %s324, 8
        %s326 = scalar_lea.vmem %s0, %s325
        %p327 = pneg %p50
        %p328 = pneg %p47
        %p329 = scmp.lt.s32.totalorder %s29, 1
        %s330 = scalar_select %p329, %s29, 1
        %s331 = smul.addr %s330, 30
        %s332 = smul.addr %s331, 8
        %s333 = scalar_lea.vmem %s1, %s332
        %p334 = pneg %p76
        %p335 = pneg %p73
        %s336 = sand.u32 %s89, 1
        %s337 = scalar_lea.sflag [#allocation3], %s336
        %s338 = sand.u32 %s89, 1
        %s339 = smul.addr %s338, 72
        %s340 = scalar_lea.vmem [#allocation2], %s339
        %p341 = pneg %p102
        %p342 = pneg %p99
        %p343 = pneg %p123
        %p344 = pneg %p120
        %p345 = pneg %p144
        %p346 = pneg %p141
        %p347 = pneg %p165
        %p348 = pneg %p162
        %p349 = pneg %p186
        %p350 = pneg %p183
        %p351 = pneg %p212
        %p352 = pneg %p209
        %s353 = sand.u32 %s199, 1
        %s354 = scalar_lea.sflag [#allocation4], %s353
        %s355 = sand.u32 %s199, 1
        %s356 = smul.addr %s355, 72
        %s357 = scalar_lea.vmem [#allocation5], %s356
        %p358 = pneg %p238
        %p359 = pneg %p235
        %s360 = sand.u32 %s225, 1
        %s361 = scalar_lea.sflag [#allocation7], %s360
        %s362 = sand.u32 %s225, 1
        %s363 = smul.addr %s362, 72
        %s364 = scalar_lea.vmem [#allocation6], %s363
        %p365 = scmp.lt.s32.totalorder %s29, 1
        %s366 = scalar_select %p365, %s29, 1
        %s367 = smul.addr %s366, 32
        %s368 = smul.addr %s367, 8
        %s369 = scalar_lea.vmem %s0, %s368
        %p370 = scmp.lt.s32.totalorder %s29, 1
        %s371 = scalar_select %p370, %s29, 1
        %s372 = smul.addr %s371, 30
        %s373 = smul.addr %s372, 8
        %s374 = scalar_lea.vmem %s1, %s373
        %v375 = vld [vmem:[%s369] sm:$0xff]
        %v376 = vld [vmem:[%s369 + $0x8] sm:$0xff]
        %v377 = vld [vmem:[%s369 + $0x10] sm:$0xff]
        %v378 = vld [vmem:[%s369 + $0x18] sm:$0xff]
        %v379 = vld [vmem:[%s369 + $0x20] sm:$0xff]
        %v380 = vld [vmem:[%s369 + $0x28] sm:$0xff]
        %v381 = vld [vmem:[%s369 + $0x30] sm:$0xff]
        %v382 = vld [vmem:[%s369 + $0x38] sm:$0xff]
        %v383 = vld [vmem:[%s369 + $0x40] sm:$0xff]
        %v384 = vld [vmem:[%s369 + $0x48] sm:$0xff]
        %v385 = vld [vmem:[%s369 + $0x50] sm:$0xff]
        %v386 = vld [vmem:[%s369 + $0x58] sm:$0xff]
        %v387 = vld [vmem:[%s369 + $0x60] sm:$0xff]
        %v388 = vld [vmem:[%s369 + $0x68] sm:$0xff]
        %v389 = vld [vmem:[%s369 + $0x70] sm:$0xff]
        %v390 = vld [vmem:[%s369 + $0x78] sm:$0xff]
        %v391 = vld [vmem:[%s369 + $0x80] sm:$0xff]
        %v392 = vld [vmem:[%s369 + $0x88] sm:$0xff]
        %v393 = vld [vmem:[%s369 + $0x90] sm:$0xff]
        %v394 = vld [vmem:[%s369 + $0x98] sm:$0xff]
        %v395 = vld [vmem:[%s369 + $0xa0] sm:$0xff]
        %v396 = vld [vmem:[%s369 + $0xa8] sm:$0xff]
        %v397 = vld [vmem:[%s369 + $0xb0] sm:$0xff]
        %v398 = vld [vmem:[%s369 + $0xb8] sm:$0xff]
        %v399 = vld [vmem:[%s369 + $0xc0] sm:$0xff]
        %v400 = vld [vmem:[%s369 + $0xc8] sm:$0xff]
        %v401 = vld [vmem:[%s369 + $0xd0] sm:$0xff]
        %v402 = vld [vmem:[%s369 + $0xd8] sm:$0xff]
        %v403 = vld [vmem:[%s369 + $0xe0] sm:$0xff]
        %v404 = vld [vmem:[%s369 + $0xe8] sm:$0xff]
        %v405 = vld [vmem:[%s369 + $0xf0] sm:$0xff]
        %v406 = vld [vmem:[%s369 + $0xf8] sm:$0xff]
        %vm407 = vcmask 293888
        %v408 = vsel %vm407, %v375, 0.0
        %v409 = vsel %vm407, %v376, 0.0
        %v410 = vadd.f32 %v408, %v409
        %v411 = vsel %vm407, %v377, 0.0
        %v412 = vadd.f32 %v410, %v411
        %v413 = vsel %vm407, %v378, 0.0
        %v414 = vadd.f32 %v412, %v413
        %v415 = vsel %vm407, %v379, 0.0
        %v416 = vadd.f32 %v414, %v415
        %v417 = vsel %vm407, %v380, 0.0
        %v418 = vadd.f32 %v416, %v417
        %v419 = vsel %vm407, %v381, 0.0
        %v420 = vadd.f32 %v418, %v419
        %v421 = vsel %vm407, %v382, 0.0
        %v422 = vadd.f32 %v420, %v421
        %v423 = vsel %vm407, %v383, 0.0
        %v424 = vadd.f32 %v422, %v423
        %v425 = vsel %vm407, %v384, 0.0
        %v426 = vadd.f32 %v424, %v425
        %v427 = vsel %vm407, %v385, 0.0
        %v428 = vadd.f32 %v426, %v427
        %v429 = vsel %vm407, %v386, 0.0
        %v430 = vadd.f32 %v428, %v429
        %v431 = vsel %vm407, %v387, 0.0
        %v432 = vadd.f32 %v430, %v431
        %v433 = vsel %vm407, %v388, 0.0
        %v434 = vadd.f32 %v432, %v433
        %v435 = vsel %vm407, %v389, 0.0
        %v436 = vadd.f32 %v434, %v435
        %v437 = vsel %vm407, %v390, 0.0
        %v438 = vadd.f32 %v436, %v437
        %v439 = vsel %vm407, %v391, 0.0
        %v440 = vadd.f32 %v438, %v439
        %v441 = vsel %vm407, %v392, 0.0
        %v442 = vadd.f32 %v440, %v441
        %v443 = vsel %vm407, %v393, 0.0
        %v444 = vadd.f32 %v442, %v443
        %v445 = vsel %vm407, %v394, 0.0
        %v446 = vadd.f32 %v444, %v445
        %v447 = vsel %vm407, %v395, 0.0
        %v448 = vadd.f32 %v446, %v447
        %v449 = vsel %vm407, %v396, 0.0
        %v450 = vadd.f32 %v448, %v449
        %v451 = vsel %vm407, %v397, 0.0
        %v452 = vadd.f32 %v450, %v451
        %v453 = vsel %vm407, %v398, 0.0
        %v454 = vadd.f32 %v452, %v453
        %v455 = vsel %vm407, %v399, 0.0
        %v456 = vadd.f32 %v454, %v455
        %v457 = vsel %vm407, %v400, 0.0
        %v458 = vadd.f32 %v456, %v457
        %v459 = vsel %vm407, %v401, 0.0
        %v460 = vadd.f32 %v458, %v459
        %v461 = vsel %vm407, %v402, 0.0
        %v462 = vadd.f32 %v460, %v461
        %v463 = vsel %vm407, %v403, 0.0
        %v464 = vadd.f32 %v462, %v463
        %v465 = vsel %vm407, %v404, 0.0
        %v466 = vadd.f32 %v464, %v465
        %v467 = vsel %vm407, %v405, 0.0
        %v468 = vadd.f32 %v466, %v467
        %v469 = vsel %vm407, %v406, 0.0
        %v470 = vadd.f32 %v468, %v469
        %v471 = vrot.slane %v470, 4
        %v472 = vadd.f32 %v470, %v471
        %v473 = vrot.slane %v472, 2
        %v474 = vadd.f32 %v472, %v473
        %v475 = vrot.slane %v474, 1
        %v476 = vadd.f32 %v474, %v475
        %v477 = vmul.f32 %v476, 0.00390625
        %v478 = vld [vmem:[%s5] sm:$0xff]
        %v479 = vld [vmem:[%s5 + $0x8] sm:$0xff]
        %v480 = vld [vmem:[%s5 + $0x10] sm:$0xff]
        %v481 = vld [vmem:[%s5 + $0x18] sm:$0xff]
        %v482 = vld [vmem:[%s5 + $0x20] sm:$0xff]
        %v483 = vld [vmem:[%s5 + $0x28] sm:$0xff]
        %v484 = vld [vmem:[%s5 + $0x30] sm:$0xff]
        %v485 = vld [vmem:[%s5 + $0x38] sm:$0xff]
        %v486 = vld [vmem:[%s5 + $0x40] sm:$0xff]
        %v487 = vld [vmem:[%s5 + $0x48] sm:$0xff]
        %v488 = vld [vmem:[%s5 + $0x50] sm:$0xff]
        %v489 = vld [vmem:[%s5 + $0x58] sm:$0xff]
        %v490 = vld [vmem:[%s5 + $0x60] sm:$0xf]
        %v491 = vld [vmem:[%s5 + $0x68] sm:$0xf]
        %v492 = vld [vmem:[%s5 + $0x70] sm:$0xf]
        %v493 = vld [vmem:[%s6] sm:$0x7]
        %v495 = vlaneseq
        %v496 = vshrl.u32 %v495, 7
        %v497 = vsub.s32 0, %v496
        %v498 = vrot.slane %v493, %v497
        %v499 = vlaneseq
        %v500 = vshrl.u32 %v499, 7
        %v501 = vsub.s32 1, %v500
        %v502 = vrot.slane %v493, %v501
        %v503 = vlaneseq
        %v504 = vshrl.u32 %v503, 7
        %v505 = vsub.s32 2, %v504
        %v506 = vrot.slane %v493, %v505
        %v511 = vsel %vm407, %v477, 0
        %vm513 = vcmask 1043456
        %v515 = vsel %vm513, %v490, 0
        %v518 = vsel %vm513, %v491, 0
        %v521 = vsel %vm513, %v492, 0
        %523 = vmatprep.subr.mxu0 %v479
        %524 = vmatpush1.msra.mxu0 %v478
        %525 = vmatprep.subr.mxu0 %v482
        %526 = vmatpush1.msra.mxu0 %v481
        %527 = vmatprep.subr.mxu0 %v485
        %528 = vmatpush1.msra.mxu0 %v484
        %529 = vmatprep.subr.mxu0 %v488
        %530 = vmatpush1.msra.mxu0 %v487
        %531 = vmatprep.subr.mxu0 %v518
        %532 = vmatpush1.msra.mxu0 %v515
        %533 = vmatprep.subr.mxu0 0.0
        %534 = vmatpush1.msra.mxu0 0.0
        %535 = vmatprep.subr.mxu0 0.0
        %536 = vmatpush1.msra.mxu0 0.0
        %537 = vmatprep.subr.mxu0 0.0
        %538 = vmatpush1.msra.mxu0 0.0
        %539 = vmatprep.subr.mxu0 0.0
        %540 = vmatpush1.msra.mxu0 0.0
        %541 = vmatprep.subr.mxu0 0.0
        %542 = vmatpush1.msra.mxu0 0.0
        %543 = vmatprep.subr.mxu0 0.0
        %544 = vmatpush1.msra.mxu0 0.0
        %545 = vmatprep.subr.mxu0 0.0
        %546 = vmatpush1.msra.mxu0 0.0
        %547 = vmatprep.subr.mxu0 0.0
        %548 = vmatpush1.msra.mxu0 0.0
        %549 = vmatprep.subr.mxu0 0.0
        %550 = vmatpush1.msra.mxu0 0.0
        %551 = vmatprep.subr.mxu0 0.0
        %552 = vmatpush1.msra.mxu0 0.0
        %553 = vmatprep.subr.mxu0 0.0
        %554 = vmatpush1.msra.mxu0 0.0
        %555 = vmatprep.subr.mxu0 0.0
        %556 = vmatpush1.msra.mxu0 0.0
        %557 = vmatprep.subr.mxu0 0.0
        %558 = vmatpush1.msra.mxu0 0.0
        %559 = vmatprep.subr.mxu0 0.0
        %560 = vmatpush1.msra.mxu0 0.0
        %561 = vmatprep.subr.mxu0 0.0
        %562 = vmatpush1.msra.mxu0 0.0
        %563 = vmatprep.subr.mxu0 0.0
        %564 = vmatpush1.msra.mxu0 0.0
        %565 = vmatprep.subr.mxu0 0.0
        %566 = vmatpush1.msra.mxu0 0.0
        %567 = vmatprep.subr.mxu0 0.0
        %568 = vmatpush1.msra.mxu0 0.0
        %569 = vmatprep.subr.mxu0 0.0
        %570 = vmatpush1.msra.mxu0 0.0
        %571 = vmatprep.subr.mxu0 0.0
        %572 = vmatpush1.msra.mxu0 0.0
        %573 = vmatprep.subr.mxu0 0.0
        %574 = vmatpush1.msra.mxu0 0.0
        %575 = vmatprep.subr.mxu0 0.0
        %576 = vmatpush1.msra.mxu0 0.0
        %577 = vmatprep.subr.mxu0 0.0
        %578 = vmatpush1.msra.mxu0 0.0
        %579 = vmatprep.subr.mxu0 0.0
        %580 = vmatpush1.msra.mxu0 0.0
        %581 = vmatprep.subr.mxu0 0.0
        %582 = vmatpush1.msra.mxu0 0.0
        %583 = vmatprep.subr.mxu0 0.0
        %584 = vmatpush1.msra.mxu0 0.0
        %585 = vmatprep.subr.mxu0 0.0
        %586 = vmatpush1.msra.mxu0 0.0
        %587 = vmatprep.mubr.f32.mxu0 0.0
        %588 = vmatmul.mubr.f32.gmra.mrb[0].mxu0 %v511
        %v589 = vpop.f32.mrb[0].mxu0
        %v590 = vadd.f32 %v498, %v589
        %v591 = vpop.f32.mrb[0].mxu0
        %v592 = vadd.f32 %v502, %v591
        %593 = vdwg.mxu0
        %594 = vmatprep.subr.mxu0 0.0
        %595 = vmatpush1.msra.mxu0 %v480
        %596 = vmatprep.subr.mxu0 0.0
        %597 = vmatpush1.msra.mxu0 %v483
        %598 = vmatprep.subr.mxu0 0.0
        %599 = vmatpush1.msra.mxu0 %v486
        %600 = vmatprep.subr.mxu0 0.0
        %601 = vmatpush1.msra.mxu0 %v489
        %602 = vmatprep.subr.mxu0 0.0
        %603 = vmatpush1.msra.mxu0 %v521
        %604 = vmatprep.subr.mxu0 0.0
        %605 = vmatpush1.msra.mxu0 0.0
        %606 = vmatprep.subr.mxu0 0.0
        %607 = vmatpush1.msra.mxu0 0.0
        %608 = vmatprep.subr.mxu0 0.0
        %609 = vmatpush1.msra.mxu0 0.0
        %610 = vmatprep.subr.mxu0 0.0
        %611 = vmatpush1.msra.mxu0 0.0
        %612 = vmatprep.subr.mxu0 0.0
        %613 = vmatpush1.msra.mxu0 0.0
        %614 = vmatprep.subr.mxu0 0.0
        %615 = vmatpush1.msra.mxu0 0.0
        %616 = vmatprep.subr.mxu0 0.0
        %617 = vmatpush1.msra.mxu0 0.0
        %618 = vmatprep.subr.mxu0 0.0
        %619 = vmatpush1.msra.mxu0 0.0
        %620 = vmatprep.subr.mxu0 0.0
        %621 = vmatpush1.msra.mxu0 0.0
        %622 = vmatprep.subr.mxu0 0.0
        %623 = vmatpush1.msra.mxu0 0.0
        %624 = vmatprep.subr.mxu0 0.0
        %625 = vmatpush1.msra.mxu0 0.0
        %626 = vmatprep.subr.mxu0 0.0
        %627 = vmatpush1.msra.mxu0 0.0
        %628 = vmatprep.subr.mxu0 0.0
        %629 = vmatpush1.msra.mxu0 0.0
        %630 = vmatprep.subr.mxu0 0.0
        %631 = vmatpush1.msra.mxu0 0.0
        %632 = vmatprep.subr.mxu0 0.0
        %633 = vmatpush1.msra.mxu0 0.0
        %634 = vmatprep.subr.mxu0 0.0
        %635 = vmatpush1.msra.mxu0 0.0
        %636 = vmatprep.subr.mxu0 0.0
        %637 = vmatpush1.msra.mxu0 0.0
        %638 = vmatprep.subr.mxu0 0.0
        %639 = vmatpush1.msra.mxu0 0.0
        %640 = vmatprep.subr.mxu0 0.0
        %641 = vmatpush1.msra.mxu0 0.0
        %642 = vmatprep.subr.mxu0 0.0
        %643 = vmatpush1.msra.mxu0 0.0
        %644 = vmatprep.subr.mxu0 0.0
        %645 = vmatpush1.msra.mxu0 0.0
        %646 = vmatprep.subr.mxu0 0.0
        %647 = vmatpush1.msra.mxu0 0.0
        %648 = vmatprep.subr.mxu0 0.0
        %649 = vmatpush1.msra.mxu0 0.0
        %650 = vmatprep.subr.mxu0 0.0
        %651 = vmatpush1.msra.mxu0 0.0
        %652 = vmatprep.subr.mxu0 0.0
        %653 = vmatpush1.msra.mxu0 0.0
        %654 = vmatprep.subr.mxu0 0.0
        %655 = vmatpush1.msra.mxu0 0.0
        %656 = vmatprep.subr.mxu0 0.0
        %657 = vmatpush1.msra.mxu0 0.0
        %658 = vmatprep.mubr.f32.mxu0 0.0
        %659 = vmatmul.mubr.f32.gmra.mrb[0].mxu0 %v511
        %v660 = vpop.f32.mrb[0].mxu0
        %v661 = vadd.f32 %v506, %v660
        %v662 = vpop.f32.mrb[0].mxu0
        %663 = vdwg.mxu0
        %v664 = vxor.u32 %v590, 2147483648
        %v665 = vxor.u32 %v592, 2147483648
        %v666 = vxor.u32 %v661, 2147483648
        %v667 = vmul.f32 %v664, 1.442695
        %v668 = vpow.pop %v667
        %v669 = vmul.f32 %v665, 1.442695
        %v670 = vpow.pop %v669
        %v671 = vmul.f32 %v666, 1.442695
        %v672 = vpow.pop %v671
        %v673 = vadd.f32 %v668, 1.0
        %v674 = vadd.f32 %v670, 1.0
        %v675 = vadd.f32 %v672, 1.0
        %v676 = vrcp.pop %v673
        %v677 = vmul.f32 1.0, %v676
        %v678 = vrcp.pop %v674
        %v679 = vmul.f32 1.0, %v678
        %v680 = vrcp.pop %v675
        %v681 = vmul.f32 1.0, %v680
        %v682 = vld [vmem:[%s374] sm:$0x80]
        %v683 = vld [vmem:[%s374 + $0x8] sm:$0x80]
        %v684 = vld [vmem:[%s374 + $0x10] sm:$0xff]
        %v685 = vld [vmem:[%s374 + $0x18] sm:$0xff]
        %v686 = vld [vmem:[%s374 + $0x20] sm:$0xff]
        %v687 = vld [vmem:[%s374 + $0x28] sm:$0xff]
        %v688 = vld [vmem:[%s374 + $0x30] sm:$0xff]
        %v689 = vld [vmem:[%s374 + $0x38] sm:$0xff]
        %v690 = vld [vmem:[%s374 + $0x40] sm:$0xff]
        %v691 = vld [vmem:[%s374 + $0x48] sm:$0xff]
        %v692 = vld [vmem:[%s374 + $0x50] sm:$0xff]
        %v693 = vld [vmem:[%s374 + $0x58] sm:$0xff]
        %v694 = vld [vmem:[%s374 + $0x60] sm:$0xff]
        %v695 = vld [vmem:[%s374 + $0x68] sm:$0xff]
        %v696 = vld [vmem:[%s374 + $0x70] sm:$0xff]
        %v697 = vld [vmem:[%s374 + $0x78] sm:$0xff]
        %v698 = vld [vmem:[%s374 + $0x80] sm:$0xff]
        %v699 = vld [vmem:[%s374 + $0x88] sm:$0xff]
        %v700 = vld [vmem:[%s374 + $0x90] sm:$0x7f]
        %v701 = vld [vmem:[%s374 + $0x98] sm:$0x7f]
        %v702 = vld [vmem:[%s3] sm:$0xff]
        %v703 = vld [vmem:[%s3 + $0x8] sm:$0xff]
        %v704 = vld [vmem:[%s3 + $0x10] sm:$0xff]
        %v705 = vld [vmem:[%s3 + $0x18] sm:$0xff]
        %v706 = vld [vmem:[%s3 + $0x20] sm:$0xff]
        %v707 = vld [vmem:[%s3 + $0x28] sm:$0xff]
        %v708 = vld [vmem:[%s3 + $0x30] sm:$0xff]
        %v709 = vld [vmem:[%s3 + $0x38] sm:$0xff]
        %v710 = vld [vmem:[%s3 + $0x40] sm:$0xff]
        %v711 = vld [vmem:[%s3 + $0x48] sm:$0xff]
        %v712 = vld [vmem:[%s3 + $0x50] sm:$0xff]
        %v713 = vld [vmem:[%s3 + $0x58] sm:$0xff]
        %v714 = vld [vmem:[%s3 + $0x60] sm:$0xff]
        %v715 = vld [vmem:[%s3 + $0x68] sm:$0xff]
        %v716 = vld [vmem:[%s3 + $0x70] sm:$0xff]
        %v717 = vld [vmem:[%s3 + $0x78] sm:$0xff]
        %v718 = vld [vmem:[%s3 + $0x80] sm:$0xff]
        %v719 = vld [vmem:[%s3 + $0x88] sm:$0xff]
        %v720 = vld [vmem:[%s4] sm:$0x1]
        %v722 = vlaneseq
        %v723 = vshrl.u32 %v722, 7
        %v724 = vsub.s32 0, %v723
        %v725 = vrot.slane %v720, %v724
        %vm747 = vcmask 1040384
        %v748 = vrot.slane %v682, 7
        %v749 = vrot.slane %v684, 7
        %v750 = vsel %vm747, %v748, %v749
        %v751 = vrot.slane %v683, 7
        %v752 = vrot.slane %v685, 7
        %v753 = vsel %vm747, %v751, %v752
        %v754 = vrot.slane %v686, 7
        %v755 = vsel %vm747, %v749, %v754
        %v756 = vrot.slane %v687, 7
        %v757 = vsel %vm747, %v752, %v756
        %v758 = vrot.slane %v688, 7
        %v759 = vsel %vm747, %v754, %v758
        %v760 = vrot.slane %v689, 7
        %v761 = vsel %vm747, %v756, %v760
        %v762 = vrot.slane %v690, 7
        %v763 = vsel %vm747, %v758, %v762
        %v764 = vrot.slane %v691, 7
        %v765 = vsel %vm747, %v760, %v764
        %v766 = vrot.slane %v692, 7
        %v767 = vsel %vm747, %v762, %v766
        %v768 = vrot.slane %v693, 7
        %v769 = vsel %vm747, %v764, %v768
        %v770 = vrot.slane %v694, 7
        %v771 = vsel %vm747, %v766, %v770
        %v772 = vrot.slane %v695, 7
        %v773 = vsel %vm747, %v768, %v772
        %v774 = vrot.slane %v696, 7
        %v775 = vsel %vm747, %v770, %v774
        %v776 = vrot.slane %v697, 7
        %v777 = vsel %vm747, %v772, %v776
        %v778 = vrot.slane %v698, 7
        %v779 = vsel %vm747, %v774, %v778
        %v780 = vrot.slane %v699, 7
        %v781 = vsel %vm747, %v776, %v780
        %v782 = vrot.slane %v700, 7
        %v783 = vsel %vm747, %v778, %v782
        %v784 = vrot.slane %v701, 7
        %v785 = vsel %vm747, %v780, %v784
        %vm795 = vcmask 130048
        %v796 = vsel %vm795, %v753, 0
        %v798 = vsel %vm795, %v757, 0
        %v800 = vsel %vm795, %v761, 0
        %v802 = vsel %vm795, %v765, 0
        %v804 = vsel %vm795, %v769, 0
        %v806 = vsel %vm795, %v773, 0
        %v808 = vsel %vm795, %v777, 0
        %v810 = vsel %vm795, %v781, 0
        %v812 = vsel %vm795, %v785, 0
        %814 = vmatprep.subr.mxu0 0.0
        %815 = vmatpush1.msra.mxu0 %v702
        %816 = vmatprep.subr.mxu0 0.0
        %817 = vmatpush1.msra.mxu0 %v703
        %818 = vmatprep.subr.mxu0 0.0
        %819 = vmatpush1.msra.mxu0 %v704
        %820 = vmatprep.subr.mxu0 0.0
        %821 = vmatpush1.msra.mxu0 %v705
        %822 = vmatprep.subr.mxu0 0.0
        %823 = vmatpush1.msra.mxu0 %v706
        %824 = vmatprep.subr.mxu0 0.0
        %825 = vmatpush1.msra.mxu0 %v707
        %826 = vmatprep.subr.mxu0 0.0
        %827 = vmatpush1.msra.mxu0 %v708
        %828 = vmatprep.subr.mxu0 0.0
        %829 = vmatpush1.msra.mxu0 %v709
        %830 = vmatprep.subr.mxu0 0.0
        %831 = vmatpush1.msra.mxu0 %v710
        %832 = vmatprep.subr.mxu0 0.0
        %833 = vmatpush1.msra.mxu0 %v711
        %834 = vmatprep.subr.mxu0 0.0
        %835 = vmatpush1.msra.mxu0 %v712
        %836 = vmatprep.subr.mxu0 0.0
        %837 = vmatpush1.msra.mxu0 %v713
        %838 = vmatprep.subr.mxu0 0.0
        %839 = vmatpush1.msra.mxu0 %v714
        %840 = vmatprep.subr.mxu0 0.0
        %841 = vmatpush1.msra.mxu0 %v715
        %842 = vmatprep.subr.mxu0 0.0
        %843 = vmatpush1.msra.mxu0 %v716
        %844 = vmatprep.subr.mxu0 0.0
        %845 = vmatpush1.msra.mxu0 %v717
        %846 = vmatprep.subr.mxu0 0.0
        %847 = vmatpush1.msra.mxu0 %v718
        %848 = vmatprep.subr.mxu0 0.0
        %849 = vmatpush1.msra.mxu0 %v719
        %850 = vmatprep.subr.mxu0 0.0
        %851 = vmatpush1.msra.mxu0 0.0
        %852 = vmatprep.subr.mxu0 0.0
        %853 = vmatpush1.msra.mxu0 0.0
        %854 = vmatprep.subr.mxu0 0.0
        %855 = vmatpush1.msra.mxu0 0.0
        %856 = vmatprep.subr.mxu0 0.0
        %857 = vmatpush1.msra.mxu0 0.0
        %858 = vmatprep.subr.mxu0 0.0
        %859 = vmatpush1.msra.mxu0 0.0
        %860 = vmatprep.subr.mxu0 0.0
        %861 = vmatpush1.msra.mxu0 0.0
        %862 = vmatprep.subr.mxu0 0.0
        %863 = vmatpush1.msra.mxu0 0.0
        %864 = vmatprep.subr.mxu0 0.0
        %865 = vmatpush1.msra.mxu0 0.0
        %866 = vmatprep.subr.mxu0 0.0
        %867 = vmatpush1.msra.mxu0 0.0
        %868 = vmatprep.subr.mxu0 0.0
        %869 = vmatpush1.msra.mxu0 0.0
        %870 = vmatprep.subr.mxu0 0.0
        %871 = vmatpush1.msra.mxu0 0.0
        %872 = vmatprep.subr.mxu0 0.0
        %873 = vmatpush1.msra.mxu0 0.0
        %874 = vmatprep.subr.mxu0 0.0
        %875 = vmatpush1.msra.mxu0 0.0
        %876 = vmatprep.subr.mxu0 0.0
        %877 = vmatpush1.msra.mxu0 0.0
        %878 = vmatprep.mubr.f32.mxu0 %v796
        %879 = vmatmul.mubr.f32.gmra.mrb[0].mxu0 %v750
        %v880 = vpop.f32.mrb[0].mxu0
        %v881 = vadd.f32 %v725, %v880
        %v882 = vpop.f32.mrb[0].mxu0
        %883 = vmatprep.mubr.f32.mxu0 %v798
        %884 = vmatmul.mubr.f32.gmra.mrb[0].mxu0 %v755
        %v885 = vpop.f32.mrb[0].mxu0
        %v886 = vadd.f32 %v725, %v885
        %v887 = vpop.f32.mrb[0].mxu0
        %888 = vmatprep.mubr.f32.mxu0 %v800
        %889 = vmatmul.mubr.f32.gmra.mrb[0].mxu0 %v759
        %v890 = vpop.f32.mrb[0].mxu0
        %v891 = vadd.f32 %v725, %v890
        %v892 = vpop.f32.mrb[0].mxu0
        %893 = vmatprep.mubr.f32.mxu0 %v802
        %894 = vmatmul.mubr.f32.gmra.mrb[0].mxu0 %v763
        %v895 = vpop.f32.mrb[0].mxu0
        %v896 = vadd.f32 %v725, %v895
        %v897 = vpop.f32.mrb[0].mxu0
        %898 = vmatprep.mubr.f32.mxu0 %v804
        %899 = vmatmul.mubr.f32.gmra.mrb[0].mxu0 %v767
        %v900 = vpop.f32.mrb[0].mxu0
        %v901 = vadd.f32 %v725, %v900
        %v902 = vpop.f32.mrb[0].mxu0
        %903 = vmatprep.mubr.f32.mxu0 %v806
        %904 = vmatmul.mubr.f32.gmra.mrb[0].mxu0 %v771
        %v905 = vpop.f32.mrb[0].mxu0
        %v906 = vadd.f32 %v725, %v905
        %v907 = vpop.f32.mrb[0].mxu0
        %908 = vmatprep.mubr.f32.mxu0 %v808
        %909 = vmatmul.mubr.f32.gmra.mrb[0].mxu0 %v775
        %v910 = vpop.f32.mrb[0].mxu0
        %v911 = vadd.f32 %v725, %v910
        %v912 = vpop.f32.mrb[0].mxu0
        %913 = vmatprep.mubr.f32.mxu0 %v810
        %914 = vmatmul.mubr.f32.gmra.mrb[0].mxu0 %v779
        %v915 = vpop.f32.mrb[0].mxu0
        %v916 = vadd.f32 %v725, %v915
        %v917 = vpop.f32.mrb[0].mxu0
        %918 = vmatprep.mubr.f32.mxu0 %v812
        %919 = vmatmul.mubr.f32.gmra.mrb[0].mxu0 %v783
        %v920 = vpop.f32.mrb[0].mxu0
        %v921 = vadd.f32 %v725, %v920
        %v922 = vpop.f32.mrb[0].mxu0
        %923 = vdwg.mxu0
        %v924 = vld [vmem:[%s374 + $0x90] sm:$0xff]
        %v925 = vld [vmem:[%s374 + $0x98] sm:$0xff]
        %s926 = scalar_lea.vmem %s3, 144
        %v927 = vld [vmem:[%s926] sm:$0xff]
        %v928 = vld [vmem:[%s926 + $0x8] sm:$0xff]
        %v929 = vld [vmem:[%s926 + $0x10] sm:$0xff]
        %v930 = vld [vmem:[%s926 + $0x18] sm:$0xff]
        %v931 = vld [vmem:[%s926 + $0x20] sm:$0xff]
        %v932 = vld [vmem:[%s926 + $0x28] sm:$0xff]
        %v933 = vld [vmem:[%s926 + $0x30] sm:$0xff]
        %v934 = vld [vmem:[%s926 + $0x38] sm:$0xff]
        %v935 = vld [vmem:[%s926 + $0x40] sm:$0xff]
        %v936 = vld [vmem:[%s926 + $0x48] sm:$0xff]
        %v937 = vld [vmem:[%s926 + $0x50] sm:$0xff]
        %v938 = vld [vmem:[%s926 + $0x58] sm:$0xff]
        %v939 = vld [vmem:[%s926 + $0x60] sm:$0xff]
        %v940 = vld [vmem:[%s926 + $0x68] sm:$0xff]
        %v941 = vld [vmem:[%s926 + $0x70] sm:$0xff]
        %v942 = vld [vmem:[%s926 + $0x78] sm:$0xff]
        %v943 = vld [vmem:[%s926 + $0x80] sm:$0xff]
        %v944 = vld [vmem:[%s926 + $0x88] sm:$0xff]
        %v945 = vsel %vm795, %v685, 0
        %v947 = vsel %vm795, %v687, 0
        %v949 = vsel %vm795, %v689, 0
        %v951 = vsel %vm795, %v691, 0
        %v953 = vsel %vm795, %v693, 0
        %v955 = vsel %vm795, %v695, 0
        %v957 = vsel %vm795, %v697, 0
        %v959 = vsel %vm795, %v699, 0
        %v962 = vsel %vm795, %v925, 0
        %964 = vmatprep.subr.mxu0 0.0
        %965 = vmatpush1.msra.mxu0 %v927
        %966 = vmatprep.subr.mxu0 0.0
        %967 = vmatpush1.msra.mxu0 %v928
        %968 = vmatprep.subr.mxu0 0.0
        %969 = vmatpush1.msra.mxu0 %v929
        %970 = vmatprep.subr.mxu0 0.0
        %971 = vmatpush1.msra.mxu0 %v930
        %972 = vmatprep.subr.mxu0 0.0
        %973 = vmatpush1.msra.mxu0 %v931
        %974 = vmatprep.subr.mxu0 0.0
        %975 = vmatpush1.msra.mxu0 %v932
        %976 = vmatprep.subr.mxu0 0.0
        %977 = vmatpush1.msra.mxu0 %v933
        %978 = vmatprep.subr.mxu0 0.0
        %979 = vmatpush1.msra.mxu0 %v934
        %980 = vmatprep.subr.mxu0 0.0
        %981 = vmatpush1.msra.mxu0 %v935
        %982 = vmatprep.subr.mxu0 0.0
        %983 = vmatpush1.msra.mxu0 %v936
        %984 = vmatprep.subr.mxu0 0.0
        %985 = vmatpush1.msra.mxu0 %v937
        %986 = vmatprep.subr.mxu0 0.0
        %987 = vmatpush1.msra.mxu0 %v938
        %988 = vmatprep.subr.mxu0 0.0
        %989 = vmatpush1.msra.mxu0 %v939
        %990 = vmatprep.subr.mxu0 0.0
        %991 = vmatpush1.msra.mxu0 %v940
        %992 = vmatprep.subr.mxu0 0.0
        %993 = vmatpush1.msra.mxu0 %v941
        %994 = vmatprep.subr.mxu0 0.0
        %995 = vmatpush1.msra.mxu0 %v942
        %996 = vmatprep.subr.mxu0 0.0
        %997 = vmatpush1.msra.mxu0 %v943
        %998 = vmatprep.subr.mxu0 0.0
        %999 = vmatpush1.msra.mxu0 %v944
        %1000 = vmatprep.subr.mxu0 0.0
        %1001 = vmatpush1.msra.mxu0 0.0
        %1002 = vmatprep.subr.mxu0 0.0
        %1003 = vmatpush1.msra.mxu0 0.0
        %1004 = vmatprep.subr.mxu0 0.0
        %1005 = vmatpush1.msra.mxu0 0.0
        %1006 = vmatprep.subr.mxu0 0.0
        %1007 = vmatpush1.msra.mxu0 0.0
        %1008 = vmatprep.subr.mxu0 0.0
        %1009 = vmatpush1.msra.mxu0 0.0
        %1010 = vmatprep.subr.mxu0 0.0
        %1011 = vmatpush1.msra.mxu0 0.0
        %1012 = vmatprep.subr.mxu0 0.0
        %1013 = vmatpush1.msra.mxu0 0.0
        %1014 = vmatprep.subr.mxu0 0.0
        %1015 = vmatpush1.msra.mxu0 0.0
        %1016 = vmatprep.subr.mxu0 0.0
        %1017 = vmatpush1.msra.mxu0 0.0
        %1018 = vmatprep.subr.mxu0 0.0
        %1019 = vmatpush1.msra.mxu0 0.0
        %1020 = vmatprep.subr.mxu0 0.0
        %1021 = vmatpush1.msra.mxu0 0.0
        %1022 = vmatprep.subr.mxu0 0.0
        %1023 = vmatpush1.msra.mxu0 0.0
        %1024 = vmatprep.subr.mxu0 0.0
        %1025 = vmatpush1.msra.mxu0 0.0
        %1026 = vmatprep.subr.mxu0 0.0
        %1027 = vmatpush1.msra.mxu0 0.0
        %1028 = vmatprep.mubr.f32.mxu0 %v945
        %1029 = vmatmul.mubr.f32.gmra.mrb[0].mxu0 %v684
        %v1030 = vpop.f32.mrb[0].mxu0
        %v1031 = vadd.f32 0.0, %v1030
        %v1032 = vpop.f32.mrb[0].mxu0
        %1033 = vmatprep.mubr.f32.mxu0 %v947
        %1034 = vmatmul.mubr.f32.gmra.mrb[0].mxu0 %v686
        %v1035 = vpop.f32.mrb[0].mxu0
        %v1036 = vadd.f32 0.0, %v1035
        %v1037 = vpop.f32.mrb[0].mxu0
        %1038 = vmatprep.mubr.f32.mxu0 %v949
        %1039 = vmatmul.mubr.f32.gmra.mrb[0].mxu0 %v688
        %v1040 = vpop.f32.mrb[0].mxu0
        %v1041 = vadd.f32 0.0, %v1040
        %v1042 = vpop.f32.mrb[0].mxu0
        %1043 = vmatprep.mubr.f32.mxu0 %v951
        %1044 = vmatmul.mubr.f32.gmra.mrb[0].mxu0 %v690
        %v1045 = vpop.f32.mrb[0].mxu0
        %v1046 = vadd.f32 0.0, %v1045
        %v1047 = vpop.f32.mrb[0].mxu0
        %1048 = vmatprep.mubr.f32.mxu0 %v953
        %1049 = vmatmul.mubr.f32.gmra.mrb[0].mxu0 %v692
        %v1050 = vpop.f32.mrb[0].mxu0
        %v1051 = vadd.f32 0.0, %v1050
        %v1052 = vpop.f32.mrb[0].mxu0
        %1053 = vmatprep.mubr.f32.mxu0 %v955
        %1054 = vmatmul.mubr.f32.gmra.mrb[0].mxu0 %v694
        %v1055 = vpop.f32.mrb[0].mxu0
        %v1056 = vadd.f32 0.0, %v1055
        %v1057 = vpop.f32.mrb[0].mxu0
        %1058 = vmatprep.mubr.f32.mxu0 %v957
        %1059 = vmatmul.mubr.f32.gmra.mrb[0].mxu0 %v696
        %v1060 = vpop.f32.mrb[0].mxu0
        %v1061 = vadd.f32 0.0, %v1060
        %v1062 = vpop.f32.mrb[0].mxu0
        %1063 = vmatprep.mubr.f32.mxu0 %v959
        %1064 = vmatmul.mubr.f32.gmra.mrb[0].mxu0 %v698
        %v1065 = vpop.f32.mrb[0].mxu0
        %v1066 = vadd.f32 0.0, %v1065
        %v1067 = vpop.f32.mrb[0].mxu0
        %1068 = vmatprep.mubr.f32.mxu0 %v962
        %1069 = vmatmul.mubr.f32.gmra.mrb[0].mxu0 %v924
        %v1070 = vpop.f32.mrb[0].mxu0
        %v1071 = vadd.f32 0.0, %v1070
        %v1072 = vpop.f32.mrb[0].mxu0
        %1073 = vdwg.mxu0
        %v1074 = vadd.f32 %v881, %v1031
        %v1075 = vadd.f32 %v886, %v1036
        %v1076 = vadd.f32 %v891, %v1041
        %v1077 = vadd.f32 %v896, %v1046
        %v1078 = vadd.f32 %v901, %v1051
        %v1079 = vadd.f32 %v906, %v1056
        %v1080 = vadd.f32 %v911, %v1061
        %v1081 = vadd.f32 %v916, %v1066
        %v1082 = vadd.f32 %v921, %v1071
        %v1083 = vld [vmem:[%s374 + $0x10] sm:$0xfe]
        %v1084 = vld [vmem:[%s374 + $0x18] sm:$0xfe]
        %v1085 = vld [vmem:[%s374 + $0x20] sm:$0xff]
        %v1086 = vld [vmem:[%s374 + $0x28] sm:$0xff]
        %v1087 = vld [vmem:[%s374 + $0x30] sm:$0xff]
        %v1088 = vld [vmem:[%s374 + $0x38] sm:$0xff]
        %v1089 = vld [vmem:[%s374 + $0x40] sm:$0xff]
        %v1090 = vld [vmem:[%s374 + $0x48] sm:$0xff]
        %v1091 = vld [vmem:[%s374 + $0x50] sm:$0xff]
        %v1092 = vld [vmem:[%s374 + $0x58] sm:$0xff]
        %v1093 = vld [vmem:[%s374 + $0x60] sm:$0xff]
        %v1094 = vld [vmem:[%s374 + $0x68] sm:$0xff]
        %v1095 = vld [vmem:[%s374 + $0x70] sm:$0xff]
        %v1096 = vld [vmem:[%s374 + $0x78] sm:$0xff]
        %v1097 = vld [vmem:[%s374 + $0x80] sm:$0xff]
        %v1098 = vld [vmem:[%s374 + $0x88] sm:$0xff]
        %v1099 = vld [vmem:[%s374 + $0x90] sm:$0xff]
        %v1100 = vld [vmem:[%s374 + $0x98] sm:$0xff]
        %v1101 = vld [vmem:[%s374 + $0xa0] sm:$0x1]
        %v1102 = vld [vmem:[%s374 + $0xa8] sm:$0x1]
        %s1103 = scalar_lea.vmem %s3, 288
        %v1104 = vld [vmem:[%s1103] sm:$0xff]
        %v1105 = vld [vmem:[%s1103 + $0x8] sm:$0xff]
        %v1106 = vld [vmem:[%s1103 + $0x10] sm:$0xff]
        %v1107 = vld [vmem:[%s1103 + $0x18] sm:$0xff]
        %v1108 = vld [vmem:[%s1103 + $0x20] sm:$0xff]
        %v1109 = vld [vmem:[%s1103 + $0x28] sm:$0xff]
        %v1110 = vld [vmem:[%s1103 + $0x30] sm:$0xff]
        %v1111 = vld [vmem:[%s1103 + $0x38] sm:$0xff]
        %v1112 = vld [vmem:[%s1103 + $0x40] sm:$0xff]
        %v1113 = vld [vmem:[%s1103 + $0x48] sm:$0xff]
        %v1114 = vld [vmem:[%s1103 + $0x50] sm:$0xff]
        %v1115 = vld [vmem:[%s1103 + $0x58] sm:$0xff]
        %v1116 = vld [vmem:[%s1103 + $0x60] sm:$0xff]
        %v1117 = vld [vmem:[%s1103 + $0x68] sm:$0xff]
        %v1118 = vld [vmem:[%s1103 + $0x70] sm:$0xff]
        %v1119 = vld [vmem:[%s1103 + $0x78] sm:$0xff]
        %v1120 = vld [vmem:[%s1103 + $0x80] sm:$0xff]
        %v1121 = vld [vmem:[%s1103 + $0x88] sm:$0xff]
        %vm1142 = vcmask 1046528
        %v1143 = vrot.slane %v1083, 1
        %v1144 = vrot.slane %v1085, 1
        %v1145 = vsel %vm1142, %v1143, %v1144
        %v1146 = vrot.slane %v1084, 1
        %v1147 = vrot.slane %v1086, 1
        %v1148 = vsel %vm1142, %v1146, %v1147
        %v1149 = vrot.slane %v1087, 1
        %v1150 = vsel %vm1142, %v1144, %v1149
        %v1151 = vrot.slane %v1088, 1
        %v1152 = vsel %vm1142, %v1147, %v1151
        %v1153 = vrot.slane %v1089, 1
        %v1154 = vsel %vm1142, %v1149, %v1153
        %v1155 = vrot.slane %v1090, 1
        %v1156 = vsel %vm1142, %v1151, %v1155
        %v1157 = vrot.slane %v1091, 1
        %v1158 = vsel %vm1142, %v1153, %v1157
        %v1159 = vrot.slane %v1092, 1
        %v1160 = vsel %vm1142, %v1155, %v1159
        %v1161 = vrot.slane %v1093, 1
        %v1162 = vsel %vm1142, %v1157, %v1161
        %v1163 = vrot.slane %v1094, 1
        %v1164 = vsel %vm1142, %v1159, %v1163
        %v1165 = vrot.slane %v1095, 1
        %v1166 = vsel %vm1142, %v1161, %v1165
        %v1167 = vrot.slane %v1096, 1
        %v1168 = vsel %vm1142, %v1163, %v1167
        %v1169 = vrot.slane %v1097, 1
        %v1170 = vsel %vm1142, %v1165, %v1169
        %v1171 = vrot.slane %v1098, 1
        %v1172 = vsel %vm1142, %v1167, %v1171
        %v1173 = vrot.slane %v1099, 1
        %v1174 = vsel %vm1142, %v1169, %v1173
        %v1175 = vrot.slane %v1100, 1
        %v1176 = vsel %vm1142, %v1171, %v1175
        %v1177 = vrot.slane %v1101, 1
        %v1178 = vsel %vm1142, %v1173, %v1177
        %v1179 = vrot.slane %v1102, 1
        %v1180 = vsel %vm1142, %v1175, %v1179
        %v1190 = vsel %vm795, %v1148, 0
        %v1192 = vsel %vm795, %v1152, 0
        %v1194 = vsel %vm795, %v1156, 0
        %v1196 = vsel %vm795, %v1160, 0
        %v1198 = vsel %vm795, %v1164, 0
        %v1200 = vsel %vm795, %v1168, 0
        %v1202 = vsel %vm795, %v1172, 0
        %v1204 = vsel %vm795, %v1176, 0
        %v1206 = vsel %vm795, %v1180, 0
        %1208 = vmatprep.subr.mxu0 0.0
        %1209 = vmatpush1.msra.mxu0 %v1104
        %1210 = vmatprep.subr.mxu0 0.0
        %1211 = vmatpush1.msra.mxu0 %v1105
        %1212 = vmatprep.subr.mxu0 0.0
        %1213 = vmatpush1.msra.mxu0 %v1106
        %1214 = vmatprep.subr.mxu0 0.0
        %1215 = vmatpush1.msra.mxu0 %v1107
        %1216 = vmatprep.subr.mxu0 0.0
        %1217 = vmatpush1.msra.mxu0 %v1108
        %1218 = vmatprep.subr.mxu0 0.0
        %1219 = vmatpush1.msra.mxu0 %v1109
        %1220 = vmatprep.subr.mxu0 0.0
        %1221 = vmatpush1.msra.mxu0 %v1110
        %1222 = vmatprep.subr.mxu0 0.0
        %1223 = vmatpush1.msra.mxu0 %v1111
        %1224 = vmatprep.subr.mxu0 0.0
        %1225 = vmatpush1.msra.mxu0 %v1112
        %1226 = vmatprep.subr.mxu0 0.0
        %1227 = vmatpush1.msra.mxu0 %v1113
        %1228 = vmatprep.subr.mxu0 0.0
        %1229 = vmatpush1.msra.mxu0 %v1114
        %1230 = vmatprep.subr.mxu0 0.0
        %1231 = vmatpush1.msra.mxu0 %v1115
        %1232 = vmatprep.subr.mxu0 0.0
        %1233 = vmatpush1.msra.mxu0 %v1116
        %1234 = vmatprep.subr.mxu0 0.0
        %1235 = vmatpush1.msra.mxu0 %v1117
        %1236 = vmatprep.subr.mxu0 0.0
        %1237 = vmatpush1.msra.mxu0 %v1118
        %1238 = vmatprep.subr.mxu0 0.0
        %1239 = vmatpush1.msra.mxu0 %v1119
        %1240 = vmatprep.subr.mxu0 0.0
        %1241 = vmatpush1.msra.mxu0 %v1120
        %1242 = vmatprep.subr.mxu0 0.0
        %1243 = vmatpush1.msra.mxu0 %v1121
        %1244 = vmatprep.subr.mxu0 0.0
        %1245 = vmatpush1.msra.mxu0 0.0
        %1246 = vmatprep.subr.mxu0 0.0
        %1247 = vmatpush1.msra.mxu0 0.0
        %1248 = vmatprep.subr.mxu0 0.0
        %1249 = vmatpush1.msra.mxu0 0.0
        %1250 = vmatprep.subr.mxu0 0.0
        %1251 = vmatpush1.msra.mxu0 0.0
        %1252 = vmatprep.subr.mxu0 0.0
        %1253 = vmatpush1.msra.mxu0 0.0
        %1254 = vmatprep.subr.mxu0 0.0
        %1255 = vmatpush1.msra.mxu0 0.0
        %1256 = vmatprep.subr.mxu0 0.0
        %1257 = vmatpush1.msra.mxu0 0.0
        %1258 = vmatprep.subr.mxu0 0.0
        %1259 = vmatpush1.msra.mxu0 0.0
        %1260 = vmatprep.subr.mxu0 0.0
        %1261 = vmatpush1.msra.mxu0 0.0
        %1262 = vmatprep.subr.mxu0 0.0
        %1263 = vmatpush1.msra.mxu0 0.0
        %1264 = vmatprep.subr.mxu0 0.0
        %1265 = vmatpush1.msra.mxu0 0.0
        %1266 = vmatprep.subr.mxu0 0.0
        %1267 = vmatpush1.msra.mxu0 0.0
        %1268 = vmatprep.subr.mxu0 0.0
        %1269 = vmatpush1.msra.mxu0 0.0
        %1270 = vmatprep.subr.mxu0 0.0
        %1271 = vmatpush1.msra.mxu0 0.0
        %1272 = vmatprep.mubr.f32.mxu0 %v1190
        %1273 = vmatmul.mubr.f32.gmra.mrb[0].mxu0 %v1145
        %v1274 = vpop.f32.mrb[0].mxu0
        %v1275 = vadd.f32 0.0, %v1274
        %v1276 = vpop.f32.mrb[0].mxu0
        %1277 = vmatprep.mubr.f32.mxu0 %v1192
        %1278 = vmatmul.mubr.f32.gmra.mrb[0].mxu0 %v1150
        %v1279 = vpop.f32.mrb[0].mxu0
        %v1280 = vadd.f32 0.0, %v1279
        %v1281 = vpop.f32.mrb[0].mxu0
        %1282 = vmatprep.mubr.f32.mxu0 %v1194
        %1283 = vmatmul.mubr.f32.gmra.mrb[0].mxu0 %v1154
        %v1284 = vpop.f32.mrb[0].mxu0
        %v1285 = vadd.f32 0.0, %v1284
        %v1286 = vpop.f32.mrb[0].mxu0
        %1287 = vmatprep.mubr.f32.mxu0 %v1196
        %1288 = vmatmul.mubr.f32.gmra.mrb[0].mxu0 %v1158
        %v1289 = vpop.f32.mrb[0].mxu0
        %v1290 = vadd.f32 0.0, %v1289
        %v1291 = vpop.f32.mrb[0].mxu0
        %1292 = vmatprep.mubr.f32.mxu0 %v1198
        %1293 = vmatmul.mubr.f32.gmra.mrb[0].mxu0 %v1162
        %v1294 = vpop.f32.mrb[0].mxu0
        %v1295 = vadd.f32 0.0, %v1294
        %v1296 = vpop.f32.mrb[0].mxu0
        %1297 = vmatprep.mubr.f32.mxu0 %v1200
        %1298 = vmatmul.mubr.f32.gmra.mrb[0].mxu0 %v1166
        %v1299 = vpop.f32.mrb[0].mxu0
        %v1300 = vadd.f32 0.0, %v1299
        %v1301 = vpop.f32.mrb[0].mxu0
        %1302 = vmatprep.mubr.f32.mxu0 %v1202
        %1303 = vmatmul.mubr.f32.gmra.mrb[0].mxu0 %v1170
        %v1304 = vpop.f32.mrb[0].mxu0
        %v1305 = vadd.f32 0.0, %v1304
        %v1306 = vpop.f32.mrb[0].mxu0
        %1307 = vmatprep.mubr.f32.mxu0 %v1204
        %1308 = vmatmul.mubr.f32.gmra.mrb[0].mxu0 %v1174
        %v1309 = vpop.f32.mrb[0].mxu0
        %v1310 = vadd.f32 0.0, %v1309
        %v1311 = vpop.f32.mrb[0].mxu0
        %1312 = vmatprep.mubr.f32.mxu0 %v1206
        %1313 = vmatmul.mubr.f32.gmra.mrb[0].mxu0 %v1178
        %v1314 = vpop.f32.mrb[0].mxu0
        %v1315 = vadd.f32 0.0, %v1314
        %v1316 = vpop.f32.mrb[0].mxu0
        %1317 = vdwg.mxu0
        %v1318 = vadd.f32 %v1074, %v1275
        %v1319 = vadd.f32 %v1075, %v1280
        %v1320 = vadd.f32 %v1076, %v1285
        %v1321 = vadd.f32 %v1077, %v1290
        %v1322 = vadd.f32 %v1078, %v1295
        %v1323 = vadd.f32 %v1079, %v1300
        %v1324 = vadd.f32 %v1080, %v1305
        %v1325 = vadd.f32 %v1081, %v1310
        %v1326 = vadd.f32 %v1082, %v1315
        %v1327 = vld [vmem:[%s374 + $0x30] sm:$0xfe]
        %v1328 = vld [vmem:[%s374 + $0x38] sm:$0xfe]
        %v1329 = vld [vmem:[%s374 + $0x40] sm:$0xff]
        %v1330 = vld [vmem:[%s374 + $0x48] sm:$0xff]
        %v1331 = vld [vmem:[%s374 + $0x50] sm:$0xff]
        %v1332 = vld [vmem:[%s374 + $0x58] sm:$0xff]
        %v1333 = vld [vmem:[%s374 + $0x60] sm:$0xff]
        %v1334 = vld [vmem:[%s374 + $0x68] sm:$0xff]
        %v1335 = vld [vmem:[%s374 + $0x70] sm:$0xff]
        %v1336 = vld [vmem:[%s374 + $0x78] sm:$0xff]
        %v1337 = vld [vmem:[%s374 + $0x80] sm:$0xff]
        %v1338 = vld [vmem:[%s374 + $0x88] sm:$0xff]
        %v1339 = vld [vmem:[%s374 + $0x90] sm:$0xff]
        %v1340 = vld [vmem:[%s374 + $0x98] sm:$0xff]
        %v1341 = vld [vmem:[%s374 + $0xa0] sm:$0xff]
        %v1342 = vld [vmem:[%s374 + $0xa8] sm:$0xff]
        %v1343 = vld [vmem:[%s374 + $0xb0] sm:$0xff]
        %v1344 = vld [vmem:[%s374 + $0xb8] sm:$0xff]
        %v1345 = vld [vmem:[%s374 + $0xc0] sm:$0x1]
        %v1346 = vld [vmem:[%s374 + $0xc8] sm:$0x1]
        %s1347 = scalar_lea.vmem %s3, 432
        %v1348 = vld [vmem:[%s1347] sm:$0xff]
        %v1349 = vld [vmem:[%s1347 + $0x8] sm:$0xff]
        %v1350 = vld [vmem:[%s1347 + $0x10] sm:$0xff]
        %v1351 = vld [vmem:[%s1347 + $0x18] sm:$0xff]
        %v1352 = vld [vmem:[%s1347 + $0x20] sm:$0xff]
        %v1353 = vld [vmem:[%s1347 + $0x28] sm:$0xff]
        %v1354 = vld [vmem:[%s1347 + $0x30] sm:$0xff]
        %v1355 = vld [vmem:[%s1347 + $0x38] sm:$0xff]
        %v1356 = vld [vmem:[%s1347 + $0x40] sm:$0xff]
        %v1357 = vld [vmem:[%s1347 + $0x48] sm:$0xff]
        %v1358 = vld [vmem:[%s1347 + $0x50] sm:$0xff]
        %v1359 = vld [vmem:[%s1347 + $0x58] sm:$0xff]
        %v1360 = vld [vmem:[%s1347 + $0x60] sm:$0xff]
        %v1361 = vld [vmem:[%s1347 + $0x68] sm:$0xff]
        %v1362 = vld [vmem:[%s1347 + $0x70] sm:$0xff]
        %v1363 = vld [vmem:[%s1347 + $0x78] sm:$0xff]
        %v1364 = vld [vmem:[%s1347 + $0x80] sm:$0xff]
        %v1365 = vld [vmem:[%s1347 + $0x88] sm:$0xff]
        %v1386 = vrot.slane %v1327, 1
        %v1387 = vrot.slane %v1329, 1
        %v1388 = vsel %vm1142, %v1386, %v1387
        %v1389 = vrot.slane %v1328, 1
        %v1390 = vrot.slane %v1330, 1
        %v1391 = vsel %vm1142, %v1389, %v1390
        %v1392 = vrot.slane %v1331, 1
        %v1393 = vsel %vm1142, %v1387, %v1392
        %v1394 = vrot.slane %v1332, 1
        %v1395 = vsel %vm1142, %v1390, %v1394
        %v1396 = vrot.slane %v1333, 1
        %v1397 = vsel %vm1142, %v1392, %v1396
        %v1398 = vrot.slane %v1334, 1
        %v1399 = vsel %vm1142, %v1394, %v1398
        %v1400 = vrot.slane %v1335, 1
        %v1401 = vsel %vm1142, %v1396, %v1400
        %v1402 = vrot.slane %v1336, 1
        %v1403 = vsel %vm1142, %v1398, %v1402
        %v1404 = vrot.slane %v1337, 1
        %v1405 = vsel %vm1142, %v1400, %v1404
        %v1406 = vrot.slane %v1338, 1
        %v1407 = vsel %vm1142, %v1402, %v1406
        %v1408 = vrot.slane %v1339, 1
        %v1409 = vsel %vm1142, %v1404, %v1408
        %v1410 = vrot.slane %v1340, 1
        %v1411 = vsel %vm1142, %v1406, %v1410
        %v1412 = vrot.slane %v1341, 1
        %v1413 = vsel %vm1142, %v1408, %v1412
        %v1414 = vrot.slane %v1342, 1
        %v1415 = vsel %vm1142, %v1410, %v1414
        %v1416 = vrot.slane %v1343, 1
        %v1417 = vsel %vm1142, %v1412, %v1416
        %v1418 = vrot.slane %v1344, 1
        %v1419 = vsel %vm1142, %v1414, %v1418
        %v1420 = vrot.slane %v1345, 1
        %v1421 = vsel %vm1142, %v1416, %v1420
        %v1422 = vrot.slane %v1346, 1
        %v1423 = vsel %vm1142, %v1418, %v1422
        %v1433 = vsel %vm795, %v1391, 0
        %v1435 = vsel %vm795, %v1395, 0
        %v1437 = vsel %vm795, %v1399, 0
        %v1439 = vsel %vm795, %v1403, 0
        %v1441 = vsel %vm795, %v1407, 0
        %v1443 = vsel %vm795, %v1411, 0
        %v1445 = vsel %vm795, %v1415, 0
        %v1447 = vsel %vm795, %v1419, 0
        %v1449 = vsel %vm795, %v1423, 0
        %1451 = vmatprep.subr.mxu0 0.0
        %1452 = vmatpush1.msra.mxu0 %v1348
        %1453 = vmatprep.subr.mxu0 0.0
        %1454 = vmatpush1.msra.mxu0 %v1349
        %1455 = vmatprep.subr.mxu0 0.0
        %1456 = vmatpush1.msra.mxu0 %v1350
        %1457 = vmatprep.subr.mxu0 0.0
        %1458 = vmatpush1.msra.mxu0 %v1351
        %1459 = vmatprep.subr.mxu0 0.0
        %1460 = vmatpush1.msra.mxu0 %v1352
        %1461 = vmatprep.subr.mxu0 0.0
        %1462 = vmatpush1.msra.mxu0 %v1353
        %1463 = vmatprep.subr.mxu0 0.0
        %1464 = vmatpush1.msra.mxu0 %v1354
        %1465 = vmatprep.subr.mxu0 0.0
        %1466 = vmatpush1.msra.mxu0 %v1355
        %1467 = vmatprep.subr.mxu0 0.0
        %1468 = vmatpush1.msra.mxu0 %v1356
        %1469 = vmatprep.subr.mxu0 0.0
        %1470 = vmatpush1.msra.mxu0 %v1357
        %1471 = vmatprep.subr.mxu0 0.0
        %1472 = vmatpush1.msra.mxu0 %v1358
        %1473 = vmatprep.subr.mxu0 0.0
        %1474 = vmatpush1.msra.mxu0 %v1359
        %1475 = vmatprep.subr.mxu0 0.0
        %1476 = vmatpush1.msra.mxu0 %v1360
        %1477 = vmatprep.subr.mxu0 0.0
        %1478 = vmatpush1.msra.mxu0 %v1361
        %1479 = vmatprep.subr.mxu0 0.0
        %1480 = vmatpush1.msra.mxu0 %v1362
        %1481 = vmatprep.subr.mxu0 0.0
        %1482 = vmatpush1.msra.mxu0 %v1363
        %1483 = vmatprep.subr.mxu0 0.0
        %1484 = vmatpush1.msra.mxu0 %v1364
        %1485 = vmatprep.subr.mxu0 0.0
        %1486 = vmatpush1.msra.mxu0 %v1365
        %1487 = vmatprep.subr.mxu0 0.0
        %1488 = vmatpush1.msra.mxu0 0.0
        %1489 = vmatprep.subr.mxu0 0.0
        %1490 = vmatpush1.msra.mxu0 0.0
        %1491 = vmatprep.subr.mxu0 0.0
        %1492 = vmatpush1.msra.mxu0 0.0
        %1493 = vmatprep.subr.mxu0 0.0
        %1494 = vmatpush1.msra.mxu0 0.0
        %1495 = vmatprep.subr.mxu0 0.0
        %1496 = vmatpush1.msra.mxu0 0.0
        %1497 = vmatprep.subr.mxu0 0.0
        %1498 = vmatpush1.msra.mxu0 0.0
        %1499 = vmatprep.subr.mxu0 0.0
        %1500 = vmatpush1.msra.mxu0 0.0
        %1501 = vmatprep.subr.mxu0 0.0
        %1502 = vmatpush1.msra.mxu0 0.0
        %1503 = vmatprep.subr.mxu0 0.0
        %1504 = vmatpush1.msra.mxu0 0.0
        %1505 = vmatprep.subr.mxu0 0.0
        %1506 = vmatpush1.msra.mxu0 0.0
        %1507 = vmatprep.subr.mxu0 0.0
        %1508 = vmatpush1.msra.mxu0 0.0
        %1509 = vmatprep.subr.mxu0 0.0
        %1510 = vmatpush1.msra.mxu0 0.0
        %1511 = vmatprep.subr.mxu0 0.0
        %1512 = vmatpush1.msra.mxu0 0.0
        %1513 = vmatprep.subr.mxu0 0.0
        %1514 = vmatpush1.msra.mxu0 0.0
        %1515 = vmatprep.mubr.f32.mxu0 %v1433
        %1516 = vmatmul.mubr.f32.gmra.mrb[0].mxu0 %v1388
        %v1517 = vpop.f32.mrb[0].mxu0
        %v1518 = vadd.f32 0.0, %v1517
        %v1519 = vpop.f32.mrb[0].mxu0
        %1520 = vmatprep.mubr.f32.mxu0 %v1435
        %1521 = vmatmul.mubr.f32.gmra.mrb[0].mxu0 %v1393
        %v1522 = vpop.f32.mrb[0].mxu0
        %v1523 = vadd.f32 0.0, %v1522
        %v1524 = vpop.f32.mrb[0].mxu0
        %1525 = vmatprep.mubr.f32.mxu0 %v1437
        %1526 = vmatmul.mubr.f32.gmra.mrb[0].mxu0 %v1397
        %v1527 = vpop.f32.mrb[0].mxu0
        %v1528 = vadd.f32 0.0, %v1527
        %v1529 = vpop.f32.mrb[0].mxu0
        %1530 = vmatprep.mubr.f32.mxu0 %v1439
        %1531 = vmatmul.mubr.f32.gmra.mrb[0].mxu0 %v1401
        %v1532 = vpop.f32.mrb[0].mxu0
        %v1533 = vadd.f32 0.0, %v1532
        %v1534 = vpop.f32.mrb[0].mxu0
        %1535 = vmatprep.mubr.f32.mxu0 %v1441
        %1536 = vmatmul.mubr.f32.gmra.mrb[0].mxu0 %v1405
        %v1537 = vpop.f32.mrb[0].mxu0
        %v1538 = vadd.f32 0.0, %v1537
        %v1539 = vpop.f32.mrb[0].mxu0
        %1540 = vmatprep.mubr.f32.mxu0 %v1443
        %1541 = vmatmul.mubr.f32.gmra.mrb[0].mxu0 %v1409
        %v1542 = vpop.f32.mrb[0].mxu0
        %v1543 = vadd.f32 0.0, %v1542
        %v1544 = vpop.f32.mrb[0].mxu0
        %1545 = vmatprep.mubr.f32.mxu0 %v1445
        %1546 = vmatmul.mubr.f32.gmra.mrb[0].mxu0 %v1413
        %v1547 = vpop.f32.mrb[0].mxu0
        %v1548 = vadd.f32 0.0, %v1547
        %v1549 = vpop.f32.mrb[0].mxu0
        %1550 = vmatprep.mubr.f32.mxu0 %v1447
        %1551 = vmatmul.mubr.f32.gmra.mrb[0].mxu0 %v1417
        %v1552 = vpop.f32.mrb[0].mxu0
        %v1553 = vadd.f32 0.0, %v1552
        %v1554 = vpop.f32.mrb[0].mxu0
        %1555 = vmatprep.mubr.f32.mxu0 %v1449
        %1556 = vmatmul.mubr.f32.gmra.mrb[0].mxu0 %v1421
        %v1557 = vpop.f32.mrb[0].mxu0
        %v1558 = vadd.f32 0.0, %v1557
        %v1559 = vpop.f32.mrb[0].mxu0
        %1560 = vdwg.mxu0
        %v1561 = vadd.f32 %v1318, %v1518
        %v1562 = vadd.f32 %v1319, %v1523
        %v1563 = vadd.f32 %v1320, %v1528
        %v1564 = vadd.f32 %v1321, %v1533
        %v1565 = vadd.f32 %v1322, %v1538
        %v1566 = vadd.f32 %v1323, %v1543
        %v1567 = vadd.f32 %v1324, %v1548
        %v1568 = vadd.f32 %v1325, %v1553
        %v1569 = vadd.f32 %v1326, %v1558
        %v1570 = vld [vmem:[%s374 + $0x30] sm:$0xfc]
        %v1571 = vld [vmem:[%s374 + $0x38] sm:$0xfc]
        %v1572 = vld [vmem:[%s374 + $0xc0] sm:$0x3]
        %v1573 = vld [vmem:[%s374 + $0xc8] sm:$0x3]
        %s1574 = scalar_lea.vmem %s3, 576
        %v1575 = vld [vmem:[%s1574] sm:$0xff]
        %v1576 = vld [vmem:[%s1574 + $0x8] sm:$0xff]
        %v1577 = vld [vmem:[%s1574 + $0x10] sm:$0xff]
        %v1578 = vld [vmem:[%s1574 + $0x18] sm:$0xff]
        %v1579 = vld [vmem:[%s1574 + $0x20] sm:$0xff]
        %v1580 = vld [vmem:[%s1574 + $0x28] sm:$0xff]
        %v1581 = vld [vmem:[%s1574 + $0x30] sm:$0xff]
        %v1582 = vld [vmem:[%s1574 + $0x38] sm:$0xff]
        %v1583 = vld [vmem:[%s1574 + $0x40] sm:$0xff]
        %v1584 = vld [vmem:[%s1574 + $0x48] sm:$0xff]
        %v1585 = vld [vmem:[%s1574 + $0x50] sm:$0xff]
        %v1586 = vld [vmem:[%s1574 + $0x58] sm:$0xff]
        %v1587 = vld [vmem:[%s1574 + $0x60] sm:$0xff]
        %v1588 = vld [vmem:[%s1574 + $0x68] sm:$0xff]
        %v1589 = vld [vmem:[%s1574 + $0x70] sm:$0xff]
        %v1590 = vld [vmem:[%s1574 + $0x78] sm:$0xff]
        %v1591 = vld [vmem:[%s1574 + $0x80] sm:$0xff]
        %v1592 = vld [vmem:[%s1574 + $0x88] sm:$0xff]
        %vm1597 = vcmask 1045504
        %v1598 = vrot.slane %v1570, 2
        %v1599 = vrot.slane %v1329, 2
        %v1600 = vsel %vm1597, %v1598, %v1599
        %v1601 = vrot.slane %v1571, 2
        %v1602 = vrot.slane %v1330, 2
        %v1603 = vsel %vm1597, %v1601, %v1602
        %v1604 = vrot.slane %v1331, 2
        %v1605 = vsel %vm1597, %v1599, %v1604
        %v1606 = vrot.slane %v1332, 2
        %v1607 = vsel %vm1597, %v1602, %v1606
        %v1608 = vrot.slane %v1333, 2
        %v1609 = vsel %vm1597, %v1604, %v1608
        %v1610 = vrot.slane %v1334, 2
        %v1611 = vsel %vm1597, %v1606, %v1610
        %v1612 = vrot.slane %v1335, 2
        %v1613 = vsel %vm1597, %v1608, %v1612
        %v1614 = vrot.slane %v1336, 2
        %v1615 = vsel %vm1597, %v1610, %v1614
        %v1616 = vrot.slane %v1337, 2
        %v1617 = vsel %vm1597, %v1612, %v1616
        %v1618 = vrot.slane %v1338, 2
        %v1619 = vsel %vm1597, %v1614, %v1618
        %v1620 = vrot.slane %v1339, 2
        %v1621 = vsel %vm1597, %v1616, %v1620
        %v1622 = vrot.slane %v1340, 2
        %v1623 = vsel %vm1597, %v1618, %v1622
        %v1624 = vrot.slane %v1341, 2
        %v1625 = vsel %vm1597, %v1620, %v1624
        %v1626 = vrot.slane %v1342, 2
        %v1627 = vsel %vm1597, %v1622, %v1626
        %v1628 = vrot.slane %v1343, 2
        %v1629 = vsel %vm1597, %v1624, %v1628
        %v1630 = vrot.slane %v1344, 2
        %v1631 = vsel %vm1597, %v1626, %v1630
        %v1632 = vrot.slane %v1572, 2
        %v1633 = vsel %vm1597, %v1628, %v1632
        %v1634 = vrot.slane %v1573, 2
        %v1635 = vsel %vm1597, %v1630, %v1634
        %v1645 = vsel %vm795, %v1603, 0
        %v1647 = vsel %vm795, %v1607, 0
        %v1649 = vsel %vm795, %v1611, 0
        %v1651 = vsel %vm795, %v1615, 0
        %v1653 = vsel %vm795, %v1619, 0
        %v1655 = vsel %vm795, %v1623, 0
        %v1657 = vsel %vm795, %v1627, 0
        %v1659 = vsel %vm795, %v1631, 0
        %v1661 = vsel %vm795, %v1635, 0
        %1663 = vmatprep.subr.mxu0 0.0
        %1664 = vmatpush1.msra.mxu0 %v1575
        %1665 = vmatprep.subr.mxu0 0.0
        %1666 = vmatpush1.msra.mxu0 %v1576
        %1667 = vmatprep.subr.mxu0 0.0
        %1668 = vmatpush1.msra.mxu0 %v1577
        %1669 = vmatprep.subr.mxu0 0.0
        %1670 = vmatpush1.msra.mxu0 %v1578
        %1671 = vmatprep.subr.mxu0 0.0
        %1672 = vmatpush1.msra.mxu0 %v1579
        %1673 = vmatprep.subr.mxu0 0.0
        %1674 = vmatpush1.msra.mxu0 %v1580
        %1675 = vmatprep.subr.mxu0 0.0
        %1676 = vmatpush1.msra.mxu0 %v1581
        %1677 = vmatprep.subr.mxu0 0.0
        %1678 = vmatpush1.msra.mxu0 %v1582
        %1679 = vmatprep.subr.mxu0 0.0
        %1680 = vmatpush1.msra.mxu0 %v1583
        %1681 = vmatprep.subr.mxu0 0.0
        %1682 = vmatpush1.msra.mxu0 %v1584
        %1683 = vmatprep.subr.mxu0 0.0
        %1684 = vmatpush1.msra.mxu0 %v1585
        %1685 = vmatprep.subr.mxu0 0.0
        %1686 = vmatpush1.msra.mxu0 %v1586
        %1687 = vmatprep.subr.mxu0 0.0
        %1688 = vmatpush1.msra.mxu0 %v1587
        %1689 = vmatprep.subr.mxu0 0.0
        %1690 = vmatpush1.msra.mxu0 %v1588
        %1691 = vmatprep.subr.mxu0 0.0
        %1692 = vmatpush1.msra.mxu0 %v1589
        %1693 = vmatprep.subr.mxu0 0.0
        %1694 = vmatpush1.msra.mxu0 %v1590
        %1695 = vmatprep.subr.mxu0 0.0
        %1696 = vmatpush1.msra.mxu0 %v1591
        %1697 = vmatprep.subr.mxu0 0.0
        %1698 = vmatpush1.msra.mxu0 %v1592
        %1699 = vmatprep.subr.mxu0 0.0
        %1700 = vmatpush1.msra.mxu0 0.0
        %1701 = vmatprep.subr.mxu0 0.0
        %1702 = vmatpush1.msra.mxu0 0.0
        %1703 = vmatprep.subr.mxu0 0.0
        %1704 = vmatpush1.msra.mxu0 0.0
        %1705 = vmatprep.subr.mxu0 0.0
        %1706 = vmatpush1.msra.mxu0 0.0
        %1707 = vmatprep.subr.mxu0 0.0
        %1708 = vmatpush1.msra.mxu0 0.0
        %1709 = vmatprep.subr.mxu0 0.0
        %1710 = vmatpush1.msra.mxu0 0.0
        %1711 = vmatprep.subr.mxu0 0.0
        %1712 = vmatpush1.msra.mxu0 0.0
        %1713 = vmatprep.subr.mxu0 0.0
        %1714 = vmatpush1.msra.mxu0 0.0
        %1715 = vmatprep.subr.mxu0 0.0
        %1716 = vmatpush1.msra.mxu0 0.0
        %1717 = vmatprep.subr.mxu0 0.0
        %1718 = vmatpush1.msra.mxu0 0.0
        %1719 = vmatprep.subr.mxu0 0.0
        %1720 = vmatpush1.msra.mxu0 0.0
        %1721 = vmatprep.subr.mxu0 0.0
        %1722 = vmatpush1.msra.mxu0 0.0
        %1723 = vmatprep.subr.mxu0 0.0
        %1724 = vmatpush1.msra.mxu0 0.0
        %1725 = vmatprep.subr.mxu0 0.0
        %1726 = vmatpush1.msra.mxu0 0.0
        %1727 = vmatprep.mubr.f32.mxu0 %v1645
        %1728 = vmatmul.mubr.f32.gmra.mrb[0].mxu0 %v1600
        %v1729 = vpop.f32.mrb[0].mxu0
        %v1730 = vadd.f32 0.0, %v1729
        %v1731 = vpop.f32.mrb[0].mxu0
        %1732 = vmatprep.mubr.f32.mxu0 %v1647
        %1733 = vmatmul.mubr.f32.gmra.mrb[0].mxu0 %v1605
        %v1734 = vpop.f32.mrb[0].mxu0
        %v1735 = vadd.f32 0.0, %v1734
        %v1736 = vpop.f32.mrb[0].mxu0
        %1737 = vmatprep.mubr.f32.mxu0 %v1649
        %1738 = vmatmul.mubr.f32.gmra.mrb[0].mxu0 %v1609
        %v1739 = vpop.f32.mrb[0].mxu0
        %v1740 = vadd.f32 0.0, %v1739
        %v1741 = vpop.f32.mrb[0].mxu0
        %1742 = vmatprep.mubr.f32.mxu0 %v1651
        %1743 = vmatmul.mubr.f32.gmra.mrb[0].mxu0 %v1613
        %v1744 = vpop.f32.mrb[0].mxu0
        %v1745 = vadd.f32 0.0, %v1744
        %v1746 = vpop.f32.mrb[0].mxu0
        %1747 = vmatprep.mubr.f32.mxu0 %v1653
        %1748 = vmatmul.mubr.f32.gmra.mrb[0].mxu0 %v1617
        %v1749 = vpop.f32.mrb[0].mxu0
        %v1750 = vadd.f32 0.0, %v1749
        %v1751 = vpop.f32.mrb[0].mxu0
        %1752 = vmatprep.mubr.f32.mxu0 %v1655
        %1753 = vmatmul.mubr.f32.gmra.mrb[0].mxu0 %v1621
        %v1754 = vpop.f32.mrb[0].mxu0
        %v1755 = vadd.f32 0.0, %v1754
        %v1756 = vpop.f32.mrb[0].mxu0
        %1757 = vmatprep.mubr.f32.mxu0 %v1657
        %1758 = vmatmul.mubr.f32.gmra.mrb[0].mxu0 %v1625
        %v1759 = vpop.f32.mrb[0].mxu0
        %v1760 = vadd.f32 0.0, %v1759
        %v1761 = vpop.f32.mrb[0].mxu0
        %1762 = vmatprep.mubr.f32.mxu0 %v1659
        %1763 = vmatmul.mubr.f32.gmra.mrb[0].mxu0 %v1629
        %v1764 = vpop.f32.mrb[0].mxu0
        %v1765 = vadd.f32 0.0, %v1764
        %v1766 = vpop.f32.mrb[0].mxu0
        %1767 = vmatprep.mubr.f32.mxu0 %v1661
        %1768 = vmatmul.mubr.f32.gmra.mrb[0].mxu0 %v1633
        %v1769 = vpop.f32.mrb[0].mxu0
        %v1770 = vadd.f32 0.0, %v1769
        %v1771 = vpop.f32.mrb[0].mxu0
        %1772 = vdwg.mxu0
        %v1773 = vadd.f32 %v1561, %v1730
        %v1774 = vadd.f32 %v1562, %v1735
        %v1775 = vadd.f32 %v1563, %v1740
        %v1776 = vadd.f32 %v1564, %v1745
        %v1777 = vadd.f32 %v1565, %v1750
        %v1778 = vadd.f32 %v1566, %v1755
        %v1779 = vadd.f32 %v1567, %v1760
        %v1780 = vadd.f32 %v1568, %v1765
        %v1781 = vadd.f32 %v1569, %v1770
        %v1782 = vld [vmem:[%s374 + $0x30] sm:$0xf8]
        %v1783 = vld [vmem:[%s374 + $0x38] sm:$0xf8]
        %v1784 = vld [vmem:[%s374 + $0xc0] sm:$0x7]
        %v1785 = vld [vmem:[%s374 + $0xc8] sm:$0x7]
        %s1786 = scalar_lea.vmem %s3, 720
        %v1787 = vld [vmem:[%s1786] sm:$0xff]
        %v1788 = vld [vmem:[%s1786 + $0x8] sm:$0xff]
        %v1789 = vld [vmem:[%s1786 + $0x10] sm:$0xff]
        %v1790 = vld [vmem:[%s1786 + $0x18] sm:$0xff]
        %v1791 = vld [vmem:[%s1786 + $0x20] sm:$0xff]
        %v1792 = vld [vmem:[%s1786 + $0x28] sm:$0xff]
        %v1793 = vld [vmem:[%s1786 + $0x30] sm:$0xff]
        %v1794 = vld [vmem:[%s1786 + $0x38] sm:$0xff]
        %v1795 = vld [vmem:[%s1786 + $0x40] sm:$0xff]
        %v1796 = vld [vmem:[%s1786 + $0x48] sm:$0xff]
        %v1797 = vld [vmem:[%s1786 + $0x50] sm:$0xff]
        %v1798 = vld [vmem:[%s1786 + $0x58] sm:$0xff]
        %v1799 = vld [vmem:[%s1786 + $0x60] sm:$0xff]
        %v1800 = vld [vmem:[%s1786 + $0x68] sm:$0xff]
        %v1801 = vld [vmem:[%s1786 + $0x70] sm:$0xff]
        %v1802 = vld [vmem:[%s1786 + $0x78] sm:$0xff]
        %v1803 = vld [vmem:[%s1786 + $0x80] sm:$0xff]
        %v1804 = vld [vmem:[%s1786 + $0x88] sm:$0xff]
        %vm1809 = vcmask 1044480
        %v1810 = vrot.slane %v1782, 3
        %v1811 = vrot.slane %v1329, 3
        %v1812 = vsel %vm1809, %v1810, %v1811
        %v1813 = vrot.slane %v1783, 3
        %v1814 = vrot.slane %v1330, 3
        %v1815 = vsel %vm1809, %v1813, %v1814
        %v1816 = vrot.slane %v1331, 3
        %v1817 = vsel %vm1809, %v1811, %v1816
        %v1818 = vrot.slane %v1332, 3
        %v1819 = vsel %vm1809, %v1814, %v1818
        %v1820 = vrot.slane %v1333, 3
        %v1821 = vsel %vm1809, %v1816, %v1820
        %v1822 = vrot.slane %v1334, 3
        %v1823 = vsel %vm1809, %v1818, %v1822
        %v1824 = vrot.slane %v1335, 3
        %v1825 = vsel %vm1809, %v1820, %v1824
        %v1826 = vrot.slane %v1336, 3
        %v1827 = vsel %vm1809, %v1822, %v1826
        %v1828 = vrot.slane %v1337, 3
        %v1829 = vsel %vm1809, %v1824, %v1828
        %v1830 = vrot.slane %v1338, 3
        %v1831 = vsel %vm1809, %v1826, %v1830
        %v1832 = vrot.slane %v1339, 3
        %v1833 = vsel %vm1809, %v1828, %v1832
        %v1834 = vrot.slane %v1340, 3
        %v1835 = vsel %vm1809, %v1830, %v1834
        %v1836 = vrot.slane %v1341, 3
        %v1837 = vsel %vm1809, %v1832, %v1836
        %v1838 = vrot.slane %v1342, 3
        %v1839 = vsel %vm1809, %v1834, %v1838
        %v1840 = vrot.slane %v1343, 3
        %v1841 = vsel %vm1809, %v1836, %v1840
        %v1842 = vrot.slane %v1344, 3
        %v1843 = vsel %vm1809, %v1838, %v1842
        %v1844 = vrot.slane %v1784, 3
        %v1845 = vsel %vm1809, %v1840, %v1844
        %v1846 = vrot.slane %v1785, 3
        %v1847 = vsel %vm1809, %v1842, %v1846
        %v1857 = vsel %vm795, %v1815, 0
        %v1859 = vsel %vm795, %v1819, 0
        %v1861 = vsel %vm795, %v1823, 0
        %v1863 = vsel %vm795, %v1827, 0
        %v1865 = vsel %vm795, %v1831, 0
        %v1867 = vsel %vm795, %v1835, 0
        %v1869 = vsel %vm795, %v1839, 0
        %v1871 = vsel %vm795, %v1843, 0
        %v1873 = vsel %vm795, %v1847, 0
        %1875 = vmatprep.subr.mxu0 0.0
        %1876 = vmatpush1.msra.mxu0 %v1787
        %1877 = vmatprep.subr.mxu0 0.0
        %1878 = vmatpush1.msra.mxu0 %v1788
        %1879 = vmatprep.subr.mxu0 0.0
        %1880 = vmatpush1.msra.mxu0 %v1789
        %1881 = vmatprep.subr.mxu0 0.0
        %1882 = vmatpush1.msra.mxu0 %v1790
        %1883 = vmatprep.subr.mxu0 0.0
        %1884 = vmatpush1.msra.mxu0 %v1791
        %1885 = vmatprep.subr.mxu0 0.0
        %1886 = vmatpush1.msra.mxu0 %v1792
        %1887 = vmatprep.subr.mxu0 0.0
        %1888 = vmatpush1.msra.mxu0 %v1793
        %1889 = vmatprep.subr.mxu0 0.0
        %1890 = vmatpush1.msra.mxu0 %v1794
        %1891 = vmatprep.subr.mxu0 0.0
        %1892 = vmatpush1.msra.mxu0 %v1795
        %1893 = vmatprep.subr.mxu0 0.0
        %1894 = vmatpush1.msra.mxu0 %v1796
        %1895 = vmatprep.subr.mxu0 0.0
        %1896 = vmatpush1.msra.mxu0 %v1797
        %1897 = vmatprep.subr.mxu0 0.0
        %1898 = vmatpush1.msra.mxu0 %v1798
        %1899 = vmatprep.subr.mxu0 0.0
        %1900 = vmatpush1.msra.mxu0 %v1799
        %1901 = vmatprep.subr.mxu0 0.0
        %1902 = vmatpush1.msra.mxu0 %v1800
        %1903 = vmatprep.subr.mxu0 0.0
        %1904 = vmatpush1.msra.mxu0 %v1801
        %1905 = vmatprep.subr.mxu0 0.0
        %1906 = vmatpush1.msra.mxu0 %v1802
        %1907 = vmatprep.subr.mxu0 0.0
        %1908 = vmatpush1.msra.mxu0 %v1803
        %1909 = vmatprep.subr.mxu0 0.0
        %1910 = vmatpush1.msra.mxu0 %v1804
        %1911 = vmatprep.subr.mxu0 0.0
        %1912 = vmatpush1.msra.mxu0 0.0
        %1913 = vmatprep.subr.mxu0 0.0
        %1914 = vmatpush1.msra.mxu0 0.0
        %1915 = vmatprep.subr.mxu0 0.0
        %1916 = vmatpush1.msra.mxu0 0.0
        %1917 = vmatprep.subr.mxu0 0.0
        %1918 = vmatpush1.msra.mxu0 0.0
        %1919 = vmatprep.subr.mxu0 0.0
        %1920 = vmatpush1.msra.mxu0 0.0
        %1921 = vmatprep.subr.mxu0 0.0
        %1922 = vmatpush1.msra.mxu0 0.0
        %1923 = vmatprep.subr.mxu0 0.0
        %1924 = vmatpush1.msra.mxu0 0.0
        %1925 = vmatprep.subr.mxu0 0.0
        %1926 = vmatpush1.msra.mxu0 0.0
        %1927 = vmatprep.subr.mxu0 0.0
        %1928 = vmatpush1.msra.mxu0 0.0
        %1929 = vmatprep.subr.mxu0 0.0
        %1930 = vmatpush1.msra.mxu0 0.0
        %1931 = vmatprep.subr.mxu0 0.0
        %1932 = vmatpush1.msra.mxu0 0.0
        %1933 = vmatprep.subr.mxu0 0.0
        %1934 = vmatpush1.msra.mxu0 0.0
        %1935 = vmatprep.subr.mxu0 0.0
        %1936 = vmatpush1.msra.mxu0 0.0
        %1937 = vmatprep.subr.mxu0 0.0
        %1938 = vmatpush1.msra.mxu0 0.0
        %1939 = vmatprep.mubr.f32.mxu0 %v1857
        %1940 = vmatmul.mubr.f32.gmra.mrb[0].mxu0 %v1812
        %v1941 = vpop.f32.mrb[0].mxu0
        %v1942 = vadd.f32 0.0, %v1941
        %v1943 = vpop.f32.mrb[0].mxu0
        %1944 = vmatprep.mubr.f32.mxu0 %v1859
        %1945 = vmatmul.mubr.f32.gmra.mrb[0].mxu0 %v1817
        %v1946 = vpop.f32.mrb[0].mxu0
        %v1947 = vadd.f32 0.0, %v1946
        %v1948 = vpop.f32.mrb[0].mxu0
        %1949 = vmatprep.mubr.f32.mxu0 %v1861
        %1950 = vmatmul.mubr.f32.gmra.mrb[0].mxu0 %v1821
        %v1951 = vpop.f32.mrb[0].mxu0
        %v1952 = vadd.f32 0.0, %v1951
        %v1953 = vpop.f32.mrb[0].mxu0
        %1954 = vmatprep.mubr.f32.mxu0 %v1863
        %1955 = vmatmul.mubr.f32.gmra.mrb[0].mxu0 %v1825
        %v1956 = vpop.f32.mrb[0].mxu0
        %v1957 = vadd.f32 0.0, %v1956
        %v1958 = vpop.f32.mrb[0].mxu0
        %1959 = vmatprep.mubr.f32.mxu0 %v1865
        %1960 = vmatmul.mubr.f32.gmra.mrb[0].mxu0 %v1829
        %v1961 = vpop.f32.mrb[0].mxu0
        %v1962 = vadd.f32 0.0, %v1961
        %v1963 = vpop.f32.mrb[0].mxu0
        %1964 = vmatprep.mubr.f32.mxu0 %v1867
        %1965 = vmatmul.mubr.f32.gmra.mrb[0].mxu0 %v1833
        %v1966 = vpop.f32.mrb[0].mxu0
        %v1967 = vadd.f32 0.0, %v1966
        %v1968 = vpop.f32.mrb[0].mxu0
        %1969 = vmatprep.mubr.f32.mxu0 %v1869
        %1970 = vmatmul.mubr.f32.gmra.mrb[0].mxu0 %v1837
        %v1971 = vpop.f32.mrb[0].mxu0
        %v1972 = vadd.f32 0.0, %v1971
        %v1973 = vpop.f32.mrb[0].mxu0
        %1974 = vmatprep.mubr.f32.mxu0 %v1871
        %1975 = vmatmul.mubr.f32.gmra.mrb[0].mxu0 %v1841
        %v1976 = vpop.f32.mrb[0].mxu0
        %v1977 = vadd.f32 0.0, %v1976
        %v1978 = vpop.f32.mrb[0].mxu0
        %1979 = vmatprep.mubr.f32.mxu0 %v1873
        %1980 = vmatmul.mubr.f32.gmra.mrb[0].mxu0 %v1845
        %v1981 = vpop.f32.mrb[0].mxu0
        %v1982 = vadd.f32 0.0, %v1981
        %v1983 = vpop.f32.mrb[0].mxu0
        %1984 = vdwg.mxu0
        %v1985 = vadd.f32 %v1773, %v1942
        %v1986 = vadd.f32 %v1774, %v1947
        %v1987 = vadd.f32 %v1775, %v1952
        %v1988 = vadd.f32 %v1776, %v1957
        %v1989 = vadd.f32 %v1777, %v1962
        %v1990 = vadd.f32 %v1778, %v1967
        %v1991 = vadd.f32 %v1779, %v1972
        %v1992 = vadd.f32 %v1780, %v1977
        %v1993 = vadd.f32 %v1781, %v1982
        %v1994 = vld [vmem:[%s374 + $0x50] sm:$0xf8]
        %v1995 = vld [vmem:[%s374 + $0x58] sm:$0xf8]
        %v1996 = vld [vmem:[%s374 + $0x60] sm:$0xff]
        %v1997 = vld [vmem:[%s374 + $0x68] sm:$0xff]
        %v1998 = vld [vmem:[%s374 + $0x70] sm:$0xff]
        %v1999 = vld [vmem:[%s374 + $0x78] sm:$0xff]
        %v2000 = vld [vmem:[%s374 + $0x80] sm:$0xff]
        %v2001 = vld [vmem:[%s374 + $0x88] sm:$0xff]
        %v2002 = vld [vmem:[%s374 + $0x90] sm:$0xff]
        %v2003 = vld [vmem:[%s374 + $0x98] sm:$0xff]
        %v2004 = vld [vmem:[%s374 + $0xa0] sm:$0xff]
        %v2005 = vld [vmem:[%s374 + $0xa8] sm:$0xff]
        %v2006 = vld [vmem:[%s374 + $0xb0] sm:$0xff]
        %v2007 = vld [vmem:[%s374 + $0xb8] sm:$0xff]
        %v2008 = vld [vmem:[%s374 + $0xc0] sm:$0xff]
        %v2009 = vld [vmem:[%s374 + $0xc8] sm:$0xff]
        %v2010 = vld [vmem:[%s374 + $0xd0] sm:$0xff]
        %v2011 = vld [vmem:[%s374 + $0xd8] sm:$0xff]
        %v2012 = vld [vmem:[%s374 + $0xe0] sm:$0x7]
        %v2013 = vld [vmem:[%s374 + $0xe8] sm:$0x7]
        %s2014 = scalar_lea.vmem %s3, 864
        %v2015 = vld [vmem:[%s2014] sm:$0xff]
        %v2016 = vld [vmem:[%s2014 + $0x8] sm:$0xff]
        %v2017 = vld [vmem:[%s2014 + $0x10] sm:$0xff]
        %v2018 = vld [vmem:[%s2014 + $0x18] sm:$0xff]
        %v2019 = vld [vmem:[%s2014 + $0x20] sm:$0xff]
        %v2020 = vld [vmem:[%s2014 + $0x28] sm:$0xff]
        %v2021 = vld [vmem:[%s2014 + $0x30] sm:$0xff]
        %v2022 = vld [vmem:[%s2014 + $0x38] sm:$0xff]
        %v2023 = vld [vmem:[%s2014 + $0x40] sm:$0xff]
        %v2024 = vld [vmem:[%s2014 + $0x48] sm:$0xff]
        %v2025 = vld [vmem:[%s2014 + $0x50] sm:$0xff]
        %v2026 = vld [vmem:[%s2014 + $0x58] sm:$0xff]
        %v2027 = vld [vmem:[%s2014 + $0x60] sm:$0xff]
        %v2028 = vld [vmem:[%s2014 + $0x68] sm:$0xff]
        %v2029 = vld [vmem:[%s2014 + $0x70] sm:$0xff]
        %v2030 = vld [vmem:[%s2014 + $0x78] sm:$0xff]
        %v2031 = vld [vmem:[%s2014 + $0x80] sm:$0xff]
        %v2032 = vld [vmem:[%s2014 + $0x88] sm:$0xff]
        %v2053 = vrot.slane %v1994, 3
        %v2054 = vrot.slane %v1996, 3
        %v2055 = vsel %vm1809, %v2053, %v2054
        %v2056 = vrot.slane %v1995, 3
        %v2057 = vrot.slane %v1997, 3
        %v2058 = vsel %vm1809, %v2056, %v2057
        %v2059 = vrot.slane %v1998, 3
        %v2060 = vsel %vm1809, %v2054, %v2059
        %v2061 = vrot.slane %v1999, 3
        %v2062 = vsel %vm1809, %v2057, %v2061
        %v2063 = vrot.slane %v2000, 3
        %v2064 = vsel %vm1809, %v2059, %v2063
        %v2065 = vrot.slane %v2001, 3
        %v2066 = vsel %vm1809, %v2061, %v2065
        %v2067 = vrot.slane %v2002, 3
        %v2068 = vsel %vm1809, %v2063, %v2067
        %v2069 = vrot.slane %v2003, 3
        %v2070 = vsel %vm1809, %v2065, %v2069
        %v2071 = vrot.slane %v2004, 3
        %v2072 = vsel %vm1809, %v2067, %v2071
        %v2073 = vrot.slane %v2005, 3
        %v2074 = vsel %vm1809, %v2069, %v2073
        %v2075 = vrot.slane %v2006, 3
        %v2076 = vsel %vm1809, %v2071, %v2075
        %v2077 = vrot.slane %v2007, 3
        %v2078 = vsel %vm1809, %v2073, %v2077
        %v2079 = vrot.slane %v2008, 3
        %v2080 = vsel %vm1809, %v2075, %v2079
        %v2081 = vrot.slane %v2009, 3
        %v2082 = vsel %vm1809, %v2077, %v2081
        %v2083 = vrot.slane %v2010, 3
        %v2084 = vsel %vm1809, %v2079, %v2083
        %v2085 = vrot.slane %v2011, 3
        %v2086 = vsel %vm1809, %v2081, %v2085
        %v2087 = vrot.slane %v2012, 3
        %v2088 = vsel %vm1809, %v2083, %v2087
        %v2089 = vrot.slane %v2013, 3
        %v2090 = vsel %vm1809, %v2085, %v2089
        %v2100 = vsel %vm795, %v2058, 0
        %v2102 = vsel %vm795, %v2062, 0
        %v2104 = vsel %vm795, %v2066, 0
        %v2106 = vsel %vm795, %v2070, 0
        %v2108 = vsel %vm795, %v2074, 0
        %v2110 = vsel %vm795, %v2078, 0
        %v2112 = vsel %vm795, %v2082, 0
        %v2114 = vsel %vm795, %v2086, 0
        %v2116 = vsel %vm795, %v2090, 0
        %2118 = vmatprep.subr.mxu0 0.0
        %2119 = vmatpush1.msra.mxu0 %v2015
        %2120 = vmatprep.subr.mxu0 0.0
        %2121 = vmatpush1.msra.mxu0 %v2016
        %2122 = vmatprep.subr.mxu0 0.0
        %2123 = vmatpush1.msra.mxu0 %v2017
        %2124 = vmatprep.subr.mxu0 0.0
        %2125 = vmatpush1.msra.mxu0 %v2018
        %2126 = vmatprep.subr.mxu0 0.0
        %2127 = vmatpush1.msra.mxu0 %v2019
        %2128 = vmatprep.subr.mxu0 0.0
        %2129 = vmatpush1.msra.mxu0 %v2020
        %2130 = vmatprep.subr.mxu0 0.0
        %2131 = vmatpush1.msra.mxu0 %v2021
        %2132 = vmatprep.subr.mxu0 0.0
        %2133 = vmatpush1.msra.mxu0 %v2022
        %2134 = vmatprep.subr.mxu0 0.0
        %2135 = vmatpush1.msra.mxu0 %v2023
        %2136 = vmatprep.subr.mxu0 0.0
        %2137 = vmatpush1.msra.mxu0 %v2024
        %2138 = vmatprep.subr.mxu0 0.0
        %2139 = vmatpush1.msra.mxu0 %v2025
        %2140 = vmatprep.subr.mxu0 0.0
        %2141 = vmatpush1.msra.mxu0 %v2026
        %2142 = vmatprep.subr.mxu0 0.0
        %2143 = vmatpush1.msra.mxu0 %v2027
        %2144 = vmatprep.subr.mxu0 0.0
        %2145 = vmatpush1.msra.mxu0 %v2028
        %2146 = vmatprep.subr.mxu0 0.0
        %2147 = vmatpush1.msra.mxu0 %v2029
        %2148 = vmatprep.subr.mxu0 0.0
        %2149 = vmatpush1.msra.mxu0 %v2030
        %2150 = vmatprep.subr.mxu0 0.0
        %2151 = vmatpush1.msra.mxu0 %v2031
        %2152 = vmatprep.subr.mxu0 0.0
        %2153 = vmatpush1.msra.mxu0 %v2032
        %2154 = vmatprep.subr.mxu0 0.0
        %2155 = vmatpush1.msra.mxu0 0.0
        %2156 = vmatprep.subr.mxu0 0.0
        %2157 = vmatpush1.msra.mxu0 0.0
        %2158 = vmatprep.subr.mxu0 0.0
        %2159 = vmatpush1.msra.mxu0 0.0
        %2160 = vmatprep.subr.mxu0 0.0
        %2161 = vmatpush1.msra.mxu0 0.0
        %2162 = vmatprep.subr.mxu0 0.0
        %2163 = vmatpush1.msra.mxu0 0.0
        %2164 = vmatprep.subr.mxu0 0.0
        %2165 = vmatpush1.msra.mxu0 0.0
        %2166 = vmatprep.subr.mxu0 0.0
        %2167 = vmatpush1.msra.mxu0 0.0
        %2168 = vmatprep.subr.mxu0 0.0
        %2169 = vmatpush1.msra.mxu0 0.0
        %2170 = vmatprep.subr.mxu0 0.0
        %2171 = vmatpush1.msra.mxu0 0.0
        %2172 = vmatprep.subr.mxu0 0.0
        %2173 = vmatpush1.msra.mxu0 0.0
        %2174 = vmatprep.subr.mxu0 0.0
        %2175 = vmatpush1.msra.mxu0 0.0
        %2176 = vmatprep.subr.mxu0 0.0
        %2177 = vmatpush1.msra.mxu0 0.0
        %2178 = vmatprep.subr.mxu0 0.0
        %2179 = vmatpush1.msra.mxu0 0.0
        %2180 = vmatprep.subr.mxu0 0.0
        %2181 = vmatpush1.msra.mxu0 0.0
        %2182 = vmatprep.mubr.f32.mxu0 %v2100
        %2183 = vmatmul.mubr.f32.gmra.mrb[0].mxu0 %v2055
        %v2184 = vpop.f32.mrb[0].mxu0
        %v2185 = vadd.f32 0.0, %v2184
        %v2186 = vpop.f32.mrb[0].mxu0
        %2187 = vmatprep.mubr.f32.mxu0 %v2102
        %2188 = vmatmul.mubr.f32.gmra.mrb[0].mxu0 %v2060
        %v2189 = vpop.f32.mrb[0].mxu0
        %v2190 = vadd.f32 0.0, %v2189
        %v2191 = vpop.f32.mrb[0].mxu0
        %2192 = vmatprep.mubr.f32.mxu0 %v2104
        %2193 = vmatmul.mubr.f32.gmra.mrb[0].mxu0 %v2064
        %v2194 = vpop.f32.mrb[0].mxu0
        %v2195 = vadd.f32 0.0, %v2194
        %v2196 = vpop.f32.mrb[0].mxu0
        %2197 = vmatprep.mubr.f32.mxu0 %v2106
        %2198 = vmatmul.mubr.f32.gmra.mrb[0].mxu0 %v2068
        %v2199 = vpop.f32.mrb[0].mxu0
        %v2200 = vadd.f32 0.0, %v2199
        %v2201 = vpop.f32.mrb[0].mxu0
        %2202 = vmatprep.mubr.f32.mxu0 %v2108
        %2203 = vmatmul.mubr.f32.gmra.mrb[0].mxu0 %v2072
        %v2204 = vpop.f32.mrb[0].mxu0
        %v2205 = vadd.f32 0.0, %v2204
        %v2206 = vpop.f32.mrb[0].mxu0
        %2207 = vmatprep.mubr.f32.mxu0 %v2110
        %2208 = vmatmul.mubr.f32.gmra.mrb[0].mxu0 %v2076
        %v2209 = vpop.f32.mrb[0].mxu0
        %v2210 = vadd.f32 0.0, %v2209
        %v2211 = vpop.f32.mrb[0].mxu0
        %2212 = vmatprep.mubr.f32.mxu0 %v2112
        %2213 = vmatmul.mubr.f32.gmra.mrb[0].mxu0 %v2080
        %v2214 = vpop.f32.mrb[0].mxu0
        %v2215 = vadd.f32 0.0, %v2214
        %v2216 = vpop.f32.mrb[0].mxu0
        %2217 = vmatprep.mubr.f32.mxu0 %v2114
        %2218 = vmatmul.mubr.f32.gmra.mrb[0].mxu0 %v2084
        %v2219 = vpop.f32.mrb[0].mxu0
        %v2220 = vadd.f32 0.0, %v2219
        %v2221 = vpop.f32.mrb[0].mxu0
        %2222 = vmatprep.mubr.f32.mxu0 %v2116
        %2223 = vmatmul.mubr.f32.gmra.mrb[0].mxu0 %v2088
        %v2224 = vpop.f32.mrb[0].mxu0
        %v2225 = vadd.f32 0.0, %v2224
        %v2226 = vpop.f32.mrb[0].mxu0
        %2227 = vdwg.mxu0
        %v2228 = vadd.f32 %v1985, %v2185
        %v2229 = vadd.f32 %v1986, %v2190
        %v2230 = vadd.f32 %v1987, %v2195
        %v2231 = vadd.f32 %v1988, %v2200
        %v2232 = vadd.f32 %v1989, %v2205
        %v2233 = vadd.f32 %v1990, %v2210
        %v2234 = vadd.f32 %v1991, %v2215
        %v2235 = vadd.f32 %v1992, %v2220
        %v2236 = vadd.f32 %v1993, %v2225
        %v2237 = vld [vmem:[%s374 + $0x50] sm:$0xf0]
        %v2238 = vld [vmem:[%s374 + $0x58] sm:$0xf0]
        %v2239 = vld [vmem:[%s374 + $0xe0] sm:$0xf]
        %v2240 = vld [vmem:[%s374 + $0xe8] sm:$0xf]
        %s2241 = scalar_lea.vmem %s3, 1008
        %v2242 = vld [vmem:[%s2241] sm:$0xff]
        %v2243 = vld [vmem:[%s2241 + $0x8] sm:$0xff]
        %v2244 = vld [vmem:[%s2241 + $0x10] sm:$0xff]
        %v2245 = vld [vmem:[%s2241 + $0x18] sm:$0xff]
        %v2246 = vld [vmem:[%s2241 + $0x20] sm:$0xff]
        %v2247 = vld [vmem:[%s2241 + $0x28] sm:$0xff]
        %v2248 = vld [vmem:[%s2241 + $0x30] sm:$0xff]
        %v2249 = vld [vmem:[%s2241 + $0x38] sm:$0xff]
        %v2250 = vld [vmem:[%s2241 + $0x40] sm:$0xff]
        %v2251 = vld [vmem:[%s2241 + $0x48] sm:$0xff]
        %v2252 = vld [vmem:[%s2241 + $0x50] sm:$0xff]
        %v2253 = vld [vmem:[%s2241 + $0x58] sm:$0xff]
        %v2254 = vld [vmem:[%s2241 + $0x60] sm:$0xff]
        %v2255 = vld [vmem:[%s2241 + $0x68] sm:$0xff]
        %v2256 = vld [vmem:[%s2241 + $0x70] sm:$0xff]
        %v2257 = vld [vmem:[%s2241 + $0x78] sm:$0xff]
        %v2258 = vld [vmem:[%s2241 + $0x80] sm:$0xff]
        %v2259 = vld [vmem:[%s2241 + $0x88] sm:$0xff]
        %v2264 = vrot.slane %v2237, 4
        %v2265 = vrot.slane %v1996, 4
        %v2266 = vsel %vm513, %v2264, %v2265
        %v2267 = vrot.slane %v2238, 4
        %v2268 = vrot.slane %v1997, 4
        %v2269 = vsel %vm513, %v2267, %v2268
        %v2270 = vrot.slane %v1998, 4
        %v2271 = vsel %vm513, %v2265, %v2270
        %v2272 = vrot.slane %v1999, 4
        %v2273 = vsel %vm513, %v2268, %v2272
        %v2274 = vrot.slane %v2000, 4
        %v2275 = vsel %vm513, %v2270, %v2274
        %v2276 = vrot.slane %v2001, 4
        %v2277 = vsel %vm513, %v2272, %v2276
        %v2278 = vrot.slane %v2002, 4
        %v2279 = vsel %vm513, %v2274, %v2278
        %v2280 = vrot.slane %v2003, 4
        %v2281 = vsel %vm513, %v2276, %v2280
        %v2282 = vrot.slane %v2004, 4
        %v2283 = vsel %vm513, %v2278, %v2282
        %v2284 = vrot.slane %v2005, 4
        %v2285 = vsel %vm513, %v2280, %v2284
        %v2286 = vrot.slane %v2006, 4
        %v2287 = vsel %vm513, %v2282, %v2286
        %v2288 = vrot.slane %v2007, 4
        %v2289 = vsel %vm513, %v2284, %v2288
        %v2290 = vrot.slane %v2008, 4
        %v2291 = vsel %vm513, %v2286, %v2290
        %v2292 = vrot.slane %v2009, 4
        %v2293 = vsel %vm513, %v2288, %v2292
        %v2294 = vrot.slane %v2010, 4
        %v2295 = vsel %vm513, %v2290, %v2294
        %v2296 = vrot.slane %v2011, 4
        %v2297 = vsel %vm513, %v2292, %v2296
        %v2298 = vrot.slane %v2239, 4
        %v2299 = vsel %vm513, %v2294, %v2298
        %v2300 = vrot.slane %v2240, 4
        %v2301 = vsel %vm513, %v2296, %v2300
        %v2311 = vsel %vm795, %v2269, 0
        %v2313 = vsel %vm795, %v2273, 0
        %v2315 = vsel %vm795, %v2277, 0
        %v2317 = vsel %vm795, %v2281, 0
        %v2319 = vsel %vm795, %v2285, 0
        %v2321 = vsel %vm795, %v2289, 0
        %v2323 = vsel %vm795, %v2293, 0
        %v2325 = vsel %vm795, %v2297, 0
        %v2327 = vsel %vm795, %v2301, 0
        %2329 = vmatprep.subr.mxu0 0.0
        %2330 = vmatpush1.msra.mxu0 %v2242
        %2331 = vmatprep.subr.mxu0 0.0
        %2332 = vmatpush1.msra.mxu0 %v2243
        %2333 = vmatprep.subr.mxu0 0.0
        %2334 = vmatpush1.msra.mxu0 %v2244
        %2335 = vmatprep.subr.mxu0 0.0
        %2336 = vmatpush1.msra.mxu0 %v2245
        %2337 = vmatprep.subr.mxu0 0.0
        %2338 = vmatpush1.msra.mxu0 %v2246
        %2339 = vmatprep.subr.mxu0 0.0
        %2340 = vmatpush1.msra.mxu0 %v2247
        %2341 = vmatprep.subr.mxu0 0.0
        %2342 = vmatpush1.msra.mxu0 %v2248
        %2343 = vmatprep.subr.mxu0 0.0
        %2344 = vmatpush1.msra.mxu0 %v2249
        %2345 = vmatprep.subr.mxu0 0.0
        %2346 = vmatpush1.msra.mxu0 %v2250
        %2347 = vmatprep.subr.mxu0 0.0
        %2348 = vmatpush1.msra.mxu0 %v2251
        %2349 = vmatprep.subr.mxu0 0.0
        %2350 = vmatpush1.msra.mxu0 %v2252
        %2351 = vmatprep.subr.mxu0 0.0
        %2352 = vmatpush1.msra.mxu0 %v2253
        %2353 = vmatprep.subr.mxu0 0.0
        %2354 = vmatpush1.msra.mxu0 %v2254
        %2355 = vmatprep.subr.mxu0 0.0
        %2356 = vmatpush1.msra.mxu0 %v2255
        %2357 = vmatprep.subr.mxu0 0.0
        %2358 = vmatpush1.msra.mxu0 %v2256
        %2359 = vmatprep.subr.mxu0 0.0
        %2360 = vmatpush1.msra.mxu0 %v2257
        %2361 = vmatprep.subr.mxu0 0.0
        %2362 = vmatpush1.msra.mxu0 %v2258
        %2363 = vmatprep.subr.mxu0 0.0
        %2364 = vmatpush1.msra.mxu0 %v2259
        %2365 = vmatprep.subr.mxu0 0.0
        %2366 = vmatpush1.msra.mxu0 0.0
        %2367 = vmatprep.subr.mxu0 0.0
        %2368 = vmatpush1.msra.mxu0 0.0
        %2369 = vmatprep.subr.mxu0 0.0
        %2370 = vmatpush1.msra.mxu0 0.0
        %2371 = vmatprep.subr.mxu0 0.0
        %2372 = vmatpush1.msra.mxu0 0.0
        %2373 = vmatprep.subr.mxu0 0.0
        %2374 = vmatpush1.msra.mxu0 0.0
        %2375 = vmatprep.subr.mxu0 0.0
        %2376 = vmatpush1.msra.mxu0 0.0
        %2377 = vmatprep.subr.mxu0 0.0
        %2378 = vmatpush1.msra.mxu0 0.0
        %2379 = vmatprep.subr.mxu0 0.0
        %2380 = vmatpush1.msra.mxu0 0.0
        %2381 = vmatprep.subr.mxu0 0.0
        %2382 = vmatpush1.msra.mxu0 0.0
        %2383 = vmatprep.subr.mxu0 0.0
        %2384 = vmatpush1.msra.mxu0 0.0
        %2385 = vmatprep.subr.mxu0 0.0
        %2386 = vmatpush1.msra.mxu0 0.0
        %2387 = vmatprep.subr.mxu0 0.0
        %2388 = vmatpush1.msra.mxu0 0.0
        %2389 = vmatprep.subr.mxu0 0.0
        %2390 = vmatpush1.msra.mxu0 0.0
        %2391 = vmatprep.subr.mxu0 0.0
        %2392 = vmatpush1.msra.mxu0 0.0
        %2393 = vmatprep.mubr.f32.mxu0 %v2311
        %2394 = vmatmul.mubr.f32.gmra.mrb[0].mxu0 %v2266
        %v2395 = vpop.f32.mrb[0].mxu0
        %v2396 = vadd.f32 0.0, %v2395
        %v2397 = vpop.f32.mrb[0].mxu0
        %2398 = vmatprep.mubr.f32.mxu0 %v2313
        %2399 = vmatmul.mubr.f32.gmra.mrb[0].mxu0 %v2271
        %v2400 = vpop.f32.mrb[0].mxu0
        %v2401 = vadd.f32 0.0, %v2400
        %v2402 = vpop.f32.mrb[0].mxu0
        %2403 = vmatprep.mubr.f32.mxu0 %v2315
        %2404 = vmatmul.mubr.f32.gmra.mrb[0].mxu0 %v2275
        %v2405 = vpop.f32.mrb[0].mxu0
        %v2406 = vadd.f32 0.0, %v2405
        %v2407 = vpop.f32.mrb[0].mxu0
        %2408 = vmatprep.mubr.f32.mxu0 %v2317
        %2409 = vmatmul.mubr.f32.gmra.mrb[0].mxu0 %v2279
        %v2410 = vpop.f32.mrb[0].mxu0
        %v2411 = vadd.f32 0.0, %v2410
        %v2412 = vpop.f32.mrb[0].mxu0
        %2413 = vmatprep.mubr.f32.mxu0 %v2319
        %2414 = vmatmul.mubr.f32.gmra.mrb[0].mxu0 %v2283
        %v2415 = vpop.f32.mrb[0].mxu0
        %v2416 = vadd.f32 0.0, %v2415
        %v2417 = vpop.f32.mrb[0].mxu0
        %2418 = vmatprep.mubr.f32.mxu0 %v2321
        %2419 = vmatmul.mubr.f32.gmra.mrb[0].mxu0 %v2287
        %v2420 = vpop.f32.mrb[0].mxu0
        %v2421 = vadd.f32 0.0, %v2420
        %v2422 = vpop.f32.mrb[0].mxu0
        %2423 = vmatprep.mubr.f32.mxu0 %v2323
        %2424 = vmatmul.mubr.f32.gmra.mrb[0].mxu0 %v2291
        %v2425 = vpop.f32.mrb[0].mxu0
        %v2426 = vadd.f32 0.0, %v2425
        %v2427 = vpop.f32.mrb[0].mxu0
        %2428 = vmatprep.mubr.f32.mxu0 %v2325
        %2429 = vmatmul.mubr.f32.gmra.mrb[0].mxu0 %v2295
        %v2430 = vpop.f32.mrb[0].mxu0
        %v2431 = vadd.f32 0.0, %v2430
        %v2432 = vpop.f32.mrb[0].mxu0
        %2433 = vmatprep.mubr.f32.mxu0 %v2327
        %2434 = vmatmul.mubr.f32.gmra.mrb[0].mxu0 %v2299
        %v2435 = vpop.f32.mrb[0].mxu0
        %v2436 = vadd.f32 0.0, %v2435
        %v2437 = vpop.f32.mrb[0].mxu0
        %2438 = vdwg.mxu0
        %v2439 = vadd.f32 %v2228, %v2396
        %v2440 = vadd.f32 %v2229, %v2401
        %v2441 = vadd.f32 %v2230, %v2406
        %v2442 = vadd.f32 %v2231, %v2411
        %v2443 = vadd.f32 %v2232, %v2416
        %v2444 = vadd.f32 %v2233, %v2421
        %v2445 = vadd.f32 %v2234, %v2426
        %v2446 = vadd.f32 %v2235, %v2431
        %v2447 = vadd.f32 %v2236, %v2436
        %v2448 = vld [vmem:[%s374 + $0x50] sm:$0xe0]
        %v2449 = vld [vmem:[%s374 + $0x58] sm:$0xe0]
        %v2450 = vld [vmem:[%s374 + $0xe0] sm:$0x1f]
        %v2451 = vld [vmem:[%s374 + $0xe8] sm:$0x1f]
        %s2452 = scalar_lea.vmem %s3, 1152
        %v2453 = vld [vmem:[%s2452] sm:$0xff]
        %v2454 = vld [vmem:[%s2452 + $0x8] sm:$0xff]
        %v2455 = vld [vmem:[%s2452 + $0x10] sm:$0xff]
        %v2456 = vld [vmem:[%s2452 + $0x18] sm:$0xff]
        %v2457 = vld [vmem:[%s2452 + $0x20] sm:$0xff]
        %v2458 = vld [vmem:[%s2452 + $0x28] sm:$0xff]
        %v2459 = vld [vmem:[%s2452 + $0x30] sm:$0xff]
        %v2460 = vld [vmem:[%s2452 + $0x38] sm:$0xff]
        %v2461 = vld [vmem:[%s2452 + $0x40] sm:$0xff]
        %v2462 = vld [vmem:[%s2452 + $0x48] sm:$0xff]
        %v2463 = vld [vmem:[%s2452 + $0x50] sm:$0xff]
        %v2464 = vld [vmem:[%s2452 + $0x58] sm:$0xff]
        %v2465 = vld [vmem:[%s2452 + $0x60] sm:$0xff]
        %v2466 = vld [vmem:[%s2452 + $0x68] sm:$0xff]
        %v2467 = vld [vmem:[%s2452 + $0x70] sm:$0xff]
        %v2468 = vld [vmem:[%s2452 + $0x78] sm:$0xff]
        %v2469 = vld [vmem:[%s2452 + $0x80] sm:$0xff]
        %v2470 = vld [vmem:[%s2452 + $0x88] sm:$0xff]
        %vm2475 = vcmask 1042432
        %v2476 = vrot.slane %v2448, 5
        %v2477 = vrot.slane %v1996, 5
        %v2478 = vsel %vm2475, %v2476, %v2477
        %v2479 = vrot.slane %v2449, 5
        %v2480 = vrot.slane %v1997, 5
        %v2481 = vsel %vm2475, %v2479, %v2480
        %v2482 = vrot.slane %v1998, 5
        %v2483 = vsel %vm2475, %v2477, %v2482
        %v2484 = vrot.slane %v1999, 5
        %v2485 = vsel %vm2475, %v2480, %v2484
        %v2486 = vrot.slane %v2000, 5
        %v2487 = vsel %vm2475, %v2482, %v2486
        %v2488 = vrot.slane %v2001, 5
        %v2489 = vsel %vm2475, %v2484, %v2488
        %v2490 = vrot.slane %v2002, 5
        %v2491 = vsel %vm2475, %v2486, %v2490
        %v2492 = vrot.slane %v2003, 5
        %v2493 = vsel %vm2475, %v2488, %v2492
        %v2494 = vrot.slane %v2004, 5
        %v2495 = vsel %vm2475, %v2490, %v2494
        %v2496 = vrot.slane %v2005, 5
        %v2497 = vsel %vm2475, %v2492, %v2496
        %v2498 = vrot.slane %v2006, 5
        %v2499 = vsel %vm2475, %v2494, %v2498
        %v2500 = vrot.slane %v2007, 5
        %v2501 = vsel %vm2475, %v2496, %v2500
        %v2502 = vrot.slane %v2008, 5
        %v2503 = vsel %vm2475, %v2498, %v2502
        %v2504 = vrot.slane %v2009, 5
        %v2505 = vsel %vm2475, %v2500, %v2504
        %v2506 = vrot.slane %v2010, 5
        %v2507 = vsel %vm2475, %v2502, %v2506
        %v2508 = vrot.slane %v2011, 5
        %v2509 = vsel %vm2475, %v2504, %v2508
        %v2510 = vrot.slane %v2450, 5
        %v2511 = vsel %vm2475, %v2506, %v2510
        %v2512 = vrot.slane %v2451, 5
        %v2513 = vsel %vm2475, %v2508, %v2512
        %v2523 = vsel %vm795, %v2481, 0
        %v2525 = vsel %vm795, %v2485, 0
        %v2527 = vsel %vm795, %v2489, 0
        %v2529 = vsel %vm795, %v2493, 0
        %v2531 = vsel %vm795, %v2497, 0
        %v2533 = vsel %vm795, %v2501, 0
        %v2535 = vsel %vm795, %v2505, 0
        %v2537 = vsel %vm795, %v2509, 0
        %v2539 = vsel %vm795, %v2513, 0
        %2541 = vmatprep.subr.mxu0 0.0
        %2542 = vmatpush1.msra.mxu0 %v2453
        %2543 = vmatprep.subr.mxu0 0.0
        %2544 = vmatpush1.msra.mxu0 %v2454
        %2545 = vmatprep.subr.mxu0 0.0
        %2546 = vmatpush1.msra.mxu0 %v2455
        %2547 = vmatprep.subr.mxu0 0.0
        %2548 = vmatpush1.msra.mxu0 %v2456
        %2549 = vmatprep.subr.mxu0 0.0
        %2550 = vmatpush1.msra.mxu0 %v2457
        %2551 = vmatprep.subr.mxu0 0.0
        %2552 = vmatpush1.msra.mxu0 %v2458
        %2553 = vmatprep.subr.mxu0 0.0
        %2554 = vmatpush1.msra.mxu0 %v2459
        %2555 = vmatprep.subr.mxu0 0.0
        %2556 = vmatpush1.msra.mxu0 %v2460
        %2557 = vmatprep.subr.mxu0 0.0
        %2558 = vmatpush1.msra.mxu0 %v2461
        %2559 = vmatprep.subr.mxu0 0.0
        %2560 = vmatpush1.msra.mxu0 %v2462
        %2561 = vmatprep.subr.mxu0 0.0
        %2562 = vmatpush1.msra.mxu0 %v2463
        %2563 = vmatprep.subr.mxu0 0.0
        %2564 = vmatpush1.msra.mxu0 %v2464
        %2565 = vmatprep.subr.mxu0 0.0
        %2566 = vmatpush1.msra.mxu0 %v2465
        %2567 = vmatprep.subr.mxu0 0.0
        %2568 = vmatpush1.msra.mxu0 %v2466
        %2569 = vmatprep.subr.mxu0 0.0
        %2570 = vmatpush1.msra.mxu0 %v2467
        %2571 = vmatprep.subr.mxu0 0.0
        %2572 = vmatpush1.msra.mxu0 %v2468
        %2573 = vmatprep.subr.mxu0 0.0
        %2574 = vmatpush1.msra.mxu0 %v2469
        %2575 = vmatprep.subr.mxu0 0.0
        %2576 = vmatpush1.msra.mxu0 %v2470
        %2577 = vmatprep.subr.mxu0 0.0
        %2578 = vmatpush1.msra.mxu0 0.0
        %2579 = vmatprep.subr.mxu0 0.0
        %2580 = vmatpush1.msra.mxu0 0.0
        %2581 = vmatprep.subr.mxu0 0.0
        %2582 = vmatpush1.msra.mxu0 0.0
        %2583 = vmatprep.subr.mxu0 0.0
        %2584 = vmatpush1.msra.mxu0 0.0
        %2585 = vmatprep.subr.mxu0 0.0
        %2586 = vmatpush1.msra.mxu0 0.0
        %2587 = vmatprep.subr.mxu0 0.0
        %2588 = vmatpush1.msra.mxu0 0.0
        %2589 = vmatprep.subr.mxu0 0.0
        %2590 = vmatpush1.msra.mxu0 0.0
        %2591 = vmatprep.subr.mxu0 0.0
        %2592 = vmatpush1.msra.mxu0 0.0
        %2593 = vmatprep.subr.mxu0 0.0
        %2594 = vmatpush1.msra.mxu0 0.0
        %2595 = vmatprep.subr.mxu0 0.0
        %2596 = vmatpush1.msra.mxu0 0.0
        %2597 = vmatprep.subr.mxu0 0.0
        %2598 = vmatpush1.msra.mxu0 0.0
        %2599 = vmatprep.subr.mxu0 0.0
        %2600 = vmatpush1.msra.mxu0 0.0
        %2601 = vmatprep.subr.mxu0 0.0
        %2602 = vmatpush1.msra.mxu0 0.0
        %2603 = vmatprep.subr.mxu0 0.0
        %2604 = vmatpush1.msra.mxu0 0.0
        %2605 = vmatprep.mubr.f32.mxu0 %v2523
        %2606 = vmatmul.mubr.f32.gmra.mrb[0].mxu0 %v2478
        %v2607 = vpop.f32.mrb[0].mxu0
        %v2608 = vadd.f32 0.0, %v2607
        %v2609 = vpop.f32.mrb[0].mxu0
        %2610 = vmatprep.mubr.f32.mxu0 %v2525
        %2611 = vmatmul.mubr.f32.gmra.mrb[0].mxu0 %v2483
        %v2612 = vpop.f32.mrb[0].mxu0
        %v2613 = vadd.f32 0.0, %v2612
        %v2614 = vpop.f32.mrb[0].mxu0
        %2615 = vmatprep.mubr.f32.mxu0 %v2527
        %2616 = vmatmul.mubr.f32.gmra.mrb[0].mxu0 %v2487
        %v2617 = vpop.f32.mrb[0].mxu0
        %v2618 = vadd.f32 0.0, %v2617
        %v2619 = vpop.f32.mrb[0].mxu0
        %2620 = vmatprep.mubr.f32.mxu0 %v2529
        %2621 = vmatmul.mubr.f32.gmra.mrb[0].mxu0 %v2491
        %v2622 = vpop.f32.mrb[0].mxu0
        %v2623 = vadd.f32 0.0, %v2622
        %v2624 = vpop.f32.mrb[0].mxu0
        %2625 = vmatprep.mubr.f32.mxu0 %v2531
        %2626 = vmatmul.mubr.f32.gmra.mrb[0].mxu0 %v2495
        %v2627 = vpop.f32.mrb[0].mxu0
        %v2628 = vadd.f32 0.0, %v2627
        %v2629 = vpop.f32.mrb[0].mxu0
        %2630 = vmatprep.mubr.f32.mxu0 %v2533
        %2631 = vmatmul.mubr.f32.gmra.mrb[0].mxu0 %v2499
        %v2632 = vpop.f32.mrb[0].mxu0
        %v2633 = vadd.f32 0.0, %v2632
        %v2634 = vpop.f32.mrb[0].mxu0
        %2635 = vmatprep.mubr.f32.mxu0 %v2535
        %2636 = vmatmul.mubr.f32.gmra.mrb[0].mxu0 %v2503
        %v2637 = vpop.f32.mrb[0].mxu0
        %v2638 = vadd.f32 0.0, %v2637
        %v2639 = vpop.f32.mrb[0].mxu0
        %2640 = vmatprep.mubr.f32.mxu0 %v2537
        %2641 = vmatmul.mubr.f32.gmra.mrb[0].mxu0 %v2507
        %v2642 = vpop.f32.mrb[0].mxu0
        %v2643 = vadd.f32 0.0, %v2642
        %v2644 = vpop.f32.mrb[0].mxu0
        %2645 = vmatprep.mubr.f32.mxu0 %v2539
        %2646 = vmatmul.mubr.f32.gmra.mrb[0].mxu0 %v2511
        %v2647 = vpop.f32.mrb[0].mxu0
        %v2648 = vadd.f32 0.0, %v2647
        %v2649 = vpop.f32.mrb[0].mxu0
        %2650 = vdwg.mxu0
        %v2651 = vadd.f32 %v2439, %v2608
        %v2652 = vadd.f32 %v2440, %v2613
        %v2653 = vadd.f32 %v2441, %v2618
        %v2654 = vadd.f32 %v2442, %v2623
        %v2655 = vadd.f32 %v2443, %v2628
        %v2656 = vadd.f32 %v2444, %v2633
        %v2657 = vadd.f32 %v2445, %v2638
        %v2658 = vadd.f32 %v2446, %v2643
        %v2659 = vadd.f32 %v2447, %v2648
        %v2660 = vtanh.pop %v2651
        %v2661 = vtanh.pop %v2652
        %v2662 = vtanh.pop %v2653
        %v2663 = vtanh.pop %v2654
        %v2664 = vtanh.pop %v2655
        %v2665 = vtanh.pop %v2656
        %v2666 = vtanh.pop %v2657
        %v2667 = vtanh.pop %v2658
        %v2668 = vtanh.pop %v2659
        %v2669 = vld [vmem:[%s317] sm:$0xff]
        %v2670 = vld [vmem:[%s317 + $0x8] sm:$0xff]
        %v2671 = vld [vmem:[%s317 + $0x10] sm:$0xff]
        %v2672 = vld [vmem:[%s317 + $0x18] sm:$0xff]
        %v2673 = vld [vmem:[%s317 + $0x20] sm:$0xff]
        %v2674 = vld [vmem:[%s317 + $0x28] sm:$0xff]
        %v2675 = vld [vmem:[%s317 + $0x30] sm:$0xff]
        %v2676 = vld [vmem:[%s317 + $0x38] sm:$0xff]
        %v2677 = vld [vmem:[%s317 + $0x40] sm:$0xff]
        %v2678 = vlaneseq
        %v2679 = vshrl.u32 %v2678, 7
        %v2680 = vsub.s32 0, %v2679
        %v2681 = vrot.slane %v679, %v2680
        %v2682 = vmul.f32 %v2681, %v2669
        %v2683 = vmul.f32 %v2681, %v2670
        %v2684 = vmul.f32 %v2681, %v2671
        %v2685 = vmul.f32 %v2681, %v2672
        %v2686 = vmul.f32 %v2681, %v2673
        %v2687 = vmul.f32 %v2681, %v2674
        %v2688 = vmul.f32 %v2681, %v2675
        %v2689 = vmul.f32 %v2681, %v2676
        %v2690 = vmul.f32 %v2681, %v2677
        %v2691 = vlaneseq
        %v2692 = vshrl.u32 %v2691, 7
        %v2693 = vsub.s32 0, %v2692
        %v2694 = vrot.slane %v677, %v2693
        %v2695 = vmul.f32 %v2694, %v2660
        %v2696 = vmul.f32 %v2694, %v2661
        %v2697 = vmul.f32 %v2694, %v2662
        %v2698 = vmul.f32 %v2694, %v2663
        %v2699 = vmul.f32 %v2694, %v2664
        %v2700 = vmul.f32 %v2694, %v2665
        %v2701 = vmul.f32 %v2694, %v2666
        %v2702 = vmul.f32 %v2694, %v2667
        %v2703 = vmul.f32 %v2694, %v2668
        %v2704 = vadd.f32 %v2682, %v2695
        %v2705 = vadd.f32 %v2683, %v2696
        %v2706 = vadd.f32 %v2684, %v2697
        %v2707 = vadd.f32 %v2685, %v2698
        %v2708 = vadd.f32 %v2686, %v2699
        %v2709 = vadd.f32 %v2687, %v2700
        %v2710 = vadd.f32 %v2688, %v2701
        %v2711 = vadd.f32 %v2689, %v2702
        %v2712 = vadd.f32 %v2690, %v2703
        %v2713 = vtanh.pop %v2704
        %v2714 = vtanh.pop %v2705
        %v2715 = vtanh.pop %v2706
        %v2716 = vtanh.pop %v2707
        %v2717 = vtanh.pop %v2708
        %v2718 = vtanh.pop %v2709
        %v2719 = vtanh.pop %v2710
        %v2720 = vtanh.pop %v2711
        %v2721 = vtanh.pop %v2712
        %v2722 = vlaneseq
        %v2723 = vshrl.u32 %v2722, 7
        %v2724 = vsub.s32 0, %v2723
        %v2725 = vrot.slane %v681, %v2724
        %v2726 = vmul.f32 %v2725, %v2713
        %v2727 = vmul.f32 %v2725, %v2714
        %v2728 = vmul.f32 %v2725, %v2715
        %v2729 = vmul.f32 %v2725, %v2716
        %v2730 = vmul.f32 %v2725, %v2717
        %v2731 = vmul.f32 %v2725, %v2718
        %v2732 = vmul.f32 %v2725, %v2719
        %v2733 = vmul.f32 %v2725, %v2720
        %v2734 = vmul.f32 %v2725, %v2721
        %2735 = vst [vmem:[%s364] sm:$0xff] %v2704
        %2736 = vst [vmem:[%s364 + $0x8] sm:$0xff] %v2705
        %2737 = vst [vmem:[%s364 + $0x10] sm:$0xff] %v2706
        %2738 = vst [vmem:[%s364 + $0x18] sm:$0xff] %v2707
        %2739 = vst [vmem:[%s364 + $0x20] sm:$0xff] %v2708
        %2740 = vst [vmem:[%s364 + $0x28] sm:$0xff] %v2709
        %2741 = vst [vmem:[%s364 + $0x30] sm:$0xff] %v2710
        %2742 = vst [vmem:[%s364 + $0x38] sm:$0xff] %v2711
        %2743 = vst [vmem:[%s364 + $0x40] sm:$0xff] %v2712
        %2744 = vst [vmem:[%s357] sm:$0xff] %v2726
        %2745 = vst [vmem:[%s357 + $0x8] sm:$0xff] %v2727
        %2746 = vst [vmem:[%s357 + $0x10] sm:$0xff] %v2728
        %2747 = vst [vmem:[%s357 + $0x18] sm:$0xff] %v2729
        %2748 = vst [vmem:[%s357 + $0x20] sm:$0xff] %v2730
        %2749 = vst [vmem:[%s357 + $0x28] sm:$0xff] %v2731
        %2750 = vst [vmem:[%s357 + $0x30] sm:$0xff] %v2732
        %2751 = vst [vmem:[%s357 + $0x38] sm:$0xff] %v2733
        %2752 = vst [vmem:[%s357 + $0x40] sm:$0xff] %v2734
        %s2753 = sand.u32 %s199, 1
        %s2754 = scalar_lea.sflag [#allocation4], %s2753
        %s2755 = sand.u32 %s199, 1
        %s2756 = smul.addr %s2755, 72
        %s2757 = scalar_lea.vmem [#allocation5], %s2756
        %s2758 = sand.u32 %s225, 1
        %s2759 = scalar_lea.sflag [#allocation7], %s2758
        %s2760 = sand.u32 %s225, 1
        %s2761 = smul.addr %s2760, 72
        %s2762 = scalar_lea.vmem [#allocation6], %s2761
        // Predicated region
        $region53: #{tpu_custom_call.1} parent=47 // pred_check
          %p2763 = pneg %p209
        $region54: #{tpu_custom_call.1} parent=47 // pred_check_branch
          %2765 = sbr.rel (%p2763) target = $region56
        $region55: #{tpu_custom_call.1} parent=47 // pred_region
          %s2767 = ssub.s32 1152, 1152
          %2768 = vsyncadd %s2754, %s2767
          %s2769 = smul.addr %s29, 9
          %s2770 = smul.addr %s2769, 128
          %s2771 = scalar_lea.hbm %s7, %s2770
          %s2772 = sshll.u32 %s2757, 4
          %s2773 = int_to_ptr.vmem [resolvable:$true] %s2772
          %2778 = dma.vmem_to_hbm [thread:$0]  %s2773, 1152, %s2771, %s2754, 128, 128, 8
        $region56: #{tpu_custom_call.1} parent=47 // pred_fallthru
          _
        // Predicated region
        $region57: #{tpu_custom_call.1} parent=47 // pred_check
          %p2779 = pneg %p235
        $region58: #{tpu_custom_call.1} parent=47 // pred_check_branch
          %2781 = sbr.rel (%p2779) target = $region60
        $region59: #{tpu_custom_call.1} parent=47 // pred_region
          %s2783 = ssub.s32 1152, 1152
          %2784 = vsyncadd %s2759, %s2783
          %s2785 = smul.addr %s29, 9
          %s2786 = smul.addr %s2785, 128
          %s2787 = scalar_lea.hbm %s8, %s2786
          %s2788 = sshll.u32 %s2762, 4
          %s2789 = int_to_ptr.vmem [resolvable:$true] %s2788
          %2794 = dma.vmem_to_hbm [thread:$0]  %s2789, 1152, %s2787, %s2759, 128, 128, 8
        $region60: #{tpu_custom_call.1} parent=47 // pred_fallthru
          _
      $region48: #{tpu_custom_call.1} parent=5 // pred_fallthru
        _
      %p2795 = scmp.le.s32.totalorder 2, %s24
      // Predicated region
      $region61: #{tpu_custom_call.1} parent=5 // pred_check
        %p2796 = pneg %p2795
      $region62: #{tpu_custom_call.1} parent=5 // pred_check_branch
        %2798 = sbr.rel (%p2796) target = $region64
      $region63: #{tpu_custom_call.1} parent=5 // pred_region
        %s2799 = ssub.s32 %s24, 2
        // Predicated region
        $region65: #{tpu_custom_call.1} parent=63 // pred_check
          %p2800 = pneg %p215
        $region66: #{tpu_custom_call.1} parent=63 // pred_check_branch
          %2802 = sbr.rel (%p2800) target = $region68
        $region67: #{tpu_custom_call.1} parent=63 // pred_region
          %s2803 = sand.u32 %s200, 1
          %s2804 = scalar_lea.sflag [#allocation4], %s2803
          %s2805 = sand.u32 %s200, 1
          %s2806 = smul.addr %s2805, 72
          %s2807 = scalar_lea.vmem [#allocation5], %s2806
          %2808 = dma.done %s2804, 1152
        $region68: #{tpu_custom_call.1} parent=63 // pred_fallthru
          _
        // Predicated region
        $region69: #{tpu_custom_call.1} parent=63 // pred_check
          %p2809 = pneg %p241
        $region70: #{tpu_custom_call.1} parent=63 // pred_check_branch
          %2811 = sbr.rel (%p2809) target = $region72
        $region71: #{tpu_custom_call.1} parent=63 // pred_region
          %s2812 = sand.u32 %s226, 1
          %s2813 = scalar_lea.sflag [#allocation7], %s2812
          %s2814 = sand.u32 %s226, 1
          %s2815 = smul.addr %s2814, 72
          %s2816 = scalar_lea.vmem [#allocation6], %s2815
          %2817 = dma.done %s2813, 1152
        $region72: #{tpu_custom_call.1} parent=63 // pred_fallthru
          _
      $region64: #{tpu_custom_call.1} parent=5 // pred_fallthru
        _
    $region6: #{tpu_custom_call.1} parent=1 // loop_footer
      %s28 = sadd.s32 1, %s24
    $region7: #{tpu_custom_call.1} parent=1 // loop_footer_branch
      %23 = sbr.rel target = $region3
    $region8: #{tpu_custom_call.1} parent=1 // loop_exit
      _
    %2818 = vsyncpa [#allocation3], 1
    %s2819 = scalar_lea.sflag [#allocation3], 1
    %2820 = vsyncpa %s2819, 1
    %2821 = vsyncpa [#allocation4], 1
    %s2822 = scalar_lea.sflag [#allocation4], 1
    %2823 = vsyncpa %s2822, 1
    %2824 = vsyncpa [#allocation7], 1
    %s2825 = scalar_lea.sflag [#allocation7], 1
    %2826 = vsyncpa %s2825, 1

</llo_original>
